<compile_context>
chip_gen: v5e
topology: v5e:2x2
jax: 0.10.0
libtpu: 0.0.40
codegen_flags: <defaults>
</compile_context>

<pallas_src>
import math
import functools

import jax
import jax.numpy as jnp
from jax.experimental import pallas as pl
from jax.experimental.pallas import tpu as pltpu


def _round_up(x, m):
    return (x + m - 1) // m * m


# ----------------------------------------------------------------------------
# Single fused Pallas kernel: stem + full encoder stack + pooling head
# ----------------------------------------------------------------------------

def _fused_model_kernel(nhead, bblk, eps, has_proj, *refs):
    if has_proj:
        (x_ref, kb_ref, pe_ref, projw_ref,
         wqkv_ref, bqkv_ref, wo_ref, bo_ref,
         ln1g_ref, ln1b_ref, w1_ref, b1_ref, w2_ref, b2_ref,
         ln2g_ref, ln2b_ref,
         wsum_ref, linw_ref, linb_ref,
         o_ref, x_work, attn_s) = refs
    else:
        (x_ref, kb_ref, pe_ref,
         wqkv_ref, bqkv_ref, wo_ref, bo_ref,
         ln1g_ref, ln1b_ref, w1_ref, b1_ref, w2_ref, b2_ref,
         ln2g_ref, ln2b_ref,
         wsum_ref, linw_ref, linb_ref,
         o_ref, x_work, attn_s) = refs
        projw_ref = None

    l = pl.program_id(1)                    # layer index (sequential axis)
    S = x_ref.shape[1]
    E = x_ref.shape[2]
    D = pe_ref.shape[1]
    H = nhead
    Dh = D // H
    M = bblk * S                            # batch folded into matmul M

    # ---- stem: embedding projector + positional encoding (first layer step) --
    @pl.when(l == 0)
    def _stem():
        xe = x_ref[...].reshape(M, E)
        if has_proj:
            x0 = jnp.dot(xe.astype(jnp.bfloat16), projw_ref[...],
                         preferred_element_type=jnp.float32)
        else:
            x0 = xe.astype(jnp.float32)
        x_work[...] = x0 + pe_ref[...]

    x = x_work[...]                                         # (M, D) f32

    # ---- QKV projection: bf16 MXU, f32 accumulate, M = Bblk*S ----
    qkv = jnp.dot(x.astype(jnp.bfloat16), wqkv_ref[0],
                  preferred_element_type=jnp.float32) + bqkv_ref[0]   # (M, 3D)

    # ---- multi-head attention (1/sqrt(Dh) pre-folded into the Q weights).
    # Head outputs go straight into column slices of a VMEM scratch (no
    # concatenate); key-padding bias is broadcast once per batch element.
    # TODO(synk): for production head counts / long S, switch to a batched
    # (H,S,Dh) dot_general with flash-style streaming over K/V tiles.
    for b in range(bblk):
        r0 = b * S
        kb_full = jnp.broadcast_to(kb_ref[b], (S, S))       # one broadcast per b
        for h in range(H):
            c = h * Dh
            q = qkv[r0:r0 + S, c:c + Dh].astype(jnp.bfloat16)
            k = qkv[r0:r0 + S, D + c:D + c + Dh].astype(jnp.bfloat16)
            v = qkv[r0:r0 + S, 2 * D + c:2 * D + c + Dh].astype(jnp.bfloat16)
            s = jax.lax.dot_general(q, k, (((1,), (1,)), ((), ())),
                                    preferred_element_type=jnp.float32)  # (S,S)
            s = s + kb_full
            mx = jnp.max(s, axis=-1, keepdims=True)
            p = jnp.exp(s - mx)
            denom = jnp.sum(p, axis=-1, keepdims=True)
            p = p * pl.reciprocal(denom, approx=True)        # EUP reciprocal
            attn_s[r0:r0 + S, c:c + Dh] = jnp.dot(
                p.astype(jnp.bfloat16), v, preferred_element_type=jnp.float32)

    # ---- attention output projection + residual + LayerNorm1 (f32) ----
    a = jnp.dot(attn_s[...].astype(jnp.bfloat16), wo_ref[0],
                preferred_element_type=jnp.float32) + bo_ref[0]
    y = a + x
    mu = jnp.mean(y, axis=-1, keepdims=True)
    var = jnp.mean(jnp.square(y - mu), axis=-1, keepdims=True)
    y = (y - mu) * jax.lax.rsqrt(var + eps) * ln1g_ref[0] + ln1b_ref[0]

    # ---- feed-forward (ReLU) + residual + LayerNorm2 (f32) ----
    h1 = jnp.dot(y.astype(jnp.bfloat16), w1_ref[0],
                 preferred_element_type=jnp.float32) + b1_ref[0]     # (M, FF)
    h1 = jnp.maximum(h1, 0.0)
    ff = jnp.dot(h1.astype(jnp.bfloat16), w2_ref[0],
                 preferred_element_type=jnp.float32) + b2_ref[0]     # (M, D)
    z = ff + y
    mu2 = jnp.mean(z, axis=-1, keepdims=True)
    var2 = jnp.mean(jnp.square(z - mu2), axis=-1, keepdims=True)
    x_work[...] = (z - mu2) * jax.lax.rsqrt(var2 + eps) * ln2g_ref[0] + ln2b_ref[0]

    # ---- head: weighted-sum pooling over time + classifier (last layer) ----
    @pl.when(l == pl.num_programs(1) - 1)
    def _head():
        xf = x_work[...].reshape(bblk, S, D)
        pooled = jnp.sum(xf * wsum_ref[...][None, :, :], axis=1)     # (bblk, D)
        o_ref[...] = jnp.dot(pooled.astype(jnp.bfloat16), linw_ref[...],
                             preferred_element_type=jnp.float32) + linb_ref[...]


def fused_transformer_pallas(x_emb, key_bias, p, *, nhead, eps=1e-5):
    """x_emb:(B,S,E) bf16 (emb-scale pre-folded), key_bias:(B,1,S) f32
    -> (B, O_pad) f32 logits (padded to 128 lanes)."""
    B, S, E = x_emb.shape
    D = p["pe"].shape[1]
    L = p["wqkv_t"].shape[0]
    o_pad = p["lin_w_t"].shape[1]
    has_proj = p["proj_w_t"] is not None

    # Fold the whole batch into the matmul M dimension (Bblk*S rows per block).
    # TODO(synk): for large B, tile the batch (block a multiple of 8) so the
    # leading "parallel" grid axis has extent >= 2 (v7x megacore) and the
    # activation DMA pipelines; at these toy sizes one block is fastest.
    bblk = B
    nb = B // bblk
    M = bblk * S

    pe_tiled = jnp.tile(p["pe"][:S], (bblk, 1))              # (M, D)
    wsum = p["wsum_w"][:S]                                   # (S, 1)

    def lspec(a):   # per-layer stacked weight, streamed along the layer axis
        return pl.BlockSpec((1,) + a.shape[1:], lambda b, l: (l, 0, 0))

    def cspec(a):   # layer-independent weight, resident
        return pl.BlockSpec(a.shape, lambda b, l: (0,) * a.ndim)

    layer_ws = (p["wqkv_t"], p["bqkv"], p["wo_t"], p["bo"],
                p["ln1_g"], p["ln1_b"], p["w1_t"], p["b1"],
                p["w2_t"], p["b2"], p["ln2_g"], p["ln2_b"])

    inputs = [x_emb, key_bias, pe_tiled]
    in_specs = [pl.BlockSpec((bblk, S, E), lambda b, l: (b, 0, 0)),
                pl.BlockSpec((bblk, 1, S), lambda b, l: (b, 0, 0)),
                cspec(pe_tiled)]
    if has_proj:
        inputs.append(p["proj_w_t"])
        in_specs.append(cspec(p["proj_w_t"]))
    inputs.extend(layer_ws)
    in_specs.extend(lspec(w) for w in layer_ws)
    inputs.extend([wsum, p["lin_w_t"], p["lin_b"]])
    in_specs.extend([cspec(wsum), cspec(p["lin_w_t"]), cspec(p["lin_b"])])

    kernel = functools.partial(_fused_model_kernel, nhead, bblk, eps, has_proj)

    # TODO(synk): at production d_model/dim_ff, tile wqkv/w1/w2 over a K/N grid
    # (<=256-wide blocks, accumulate in VMEM) and drop buffering on the
    # constant-index weight specs to respect the v7x 64 MiB VMEM budget.
    return pl.pallas_call(
        kernel,
        out_shape=jax.ShapeDtypeStruct((B, o_pad), jnp.float32),
        grid=(nb, L),
        in_specs=in_specs,
        out_specs=pl.BlockSpec((bblk, o_pad), lambda b, l: (b, 0)),
        scratch_shapes=[pltpu.VMEM((M, D), jnp.float32),    # running activation
                        pltpu.VMEM((M, D), jnp.float32)],   # attention heads
        compiler_params=pltpu.CompilerParams(
            dimension_semantics=("parallel", "arbitrary"),
            vmem_limit_bytes=64 * 1024 * 1024),
    )(*inputs)


# ----------------------------------------------------------------------------
# Model glue (plain JAX): parameters, positional encoding, orchestration
# ----------------------------------------------------------------------------

def make_positional_encoding(seq_len, d_model):
    position = jnp.arange(seq_len, dtype=jnp.float32)[:, None]
    div_term = jnp.exp(jnp.arange(0, d_model, 2, dtype=jnp.float32)
                       * (-math.log(10000.0) / d_model))
    pe = jnp.zeros((seq_len, d_model), jnp.float32)
    pe = pe.at[:, 0::2].set(jnp.sin(position * div_term))
    pe = pe.at[:, 1::2].set(jnp.cos(position * div_term))
    return pe                                               # (S, D)


def init_params(key, *, vocab, emb_len, d_model, nhead, dim_ff, nlayers,
                max_time_step, output_size):
    """Matmul weights pre-transposed (K,N), bf16; scales pre-folded; per-layer
    weights stacked with a leading layer axis; biases / LN params f32."""
    initrange = 0.1
    keys = jax.random.split(key, 6 + nlayers)
    p = {}
    # sqrt(emb_len) embedding scale folded into the (bf16) table.
    p["emb"] = (jax.random.normal(keys[0], (vocab, emb_len), jnp.float32)
                * math.sqrt(emb_len)).astype(jnp.bfloat16)
    if emb_len != d_model:
        proj_w = jax.random.uniform(keys[1], (d_model, emb_len), jnp.float32,
                                    -initrange, initrange)
        p["proj_w_t"] = proj_w.T.astype(jnp.bfloat16)        # (E, D)
    else:
        p["proj_w_t"] = None
    wsum_w = jax.random.uniform(keys[2], (1, max_time_step), jnp.float32,
                                -initrange, initrange)
    p["wsum_w"] = wsum_w.T                                   # (S, 1) f32

    o_pad = _round_up(output_size, 128)                      # lane-dense output
    lin_w = jax.random.uniform(keys[3], (output_size, d_model), jnp.float32,
                               -initrange, initrange)
    lin_w_t = jnp.zeros((d_model, o_pad), jnp.float32).at[:, :output_size].set(lin_w.T)
    p["lin_w_t"] = lin_w_t.astype(jnp.bfloat16)              # (D, O_pad)
    p["lin_b"] = jnp.zeros((1, o_pad), jnp.float32)
    p["pe"] = make_positional_encoding(max_time_step, d_model)

    attn_scale = 1.0 / math.sqrt(d_model // nhead)
    wqkv, bqkv, wo, bo = [], [], [], []
    w1, b1, w2, b2 = [], [], [], []
    ln1g, ln1b, ln2g, ln2b = [], [], [], []
    for li in range(nlayers):
        k0, k1, k2, k3 = jax.random.split(keys[6 + li], 4)
        in_proj_w = jax.random.uniform(k0, (3 * d_model, d_model), jnp.float32,
                                       -initrange, initrange)
        w_t = in_proj_w.T                                    # (D, 3D)
        w_t = w_t.at[:, :d_model].multiply(attn_scale)       # fold 1/sqrt(Dh) into Q
        wqkv.append(w_t.astype(jnp.bfloat16))
        b_qkv = jnp.zeros((1, 3 * d_model), jnp.float32)
        b_qkv = b_qkv.at[:, :d_model].multiply(attn_scale)   # (no-op for zero bias)
        bqkv.append(b_qkv)
        out_proj_w = jax.random.uniform(k1, (d_model, d_model), jnp.float32,
                                        -initrange, initrange)
        wo.append(out_proj_w.T.astype(jnp.bfloat16))
        bo.append(jnp.zeros((1, d_model), jnp.float32))
        ffn_w1 = jax.random.uniform(k2, (dim_ff, d_model), jnp.float32,
                                    -initrange, initrange)
        w1.append(ffn_w1.T.astype(jnp.bfloat16))
        b1.append(jnp.zeros((1, dim_ff), jnp.float32))
        ffn_w2 = jax.random.uniform(k3, (d_model, dim_ff), jnp.float32,
                                    -initrange, initrange)
        w2.append(ffn_w2.T.astype(jnp.bfloat16))
        b2.append(jnp.zeros((1, d_model), jnp.float32))
        ln1g.append(jnp.ones((1, d_model), jnp.float32))
        ln1b.append(jnp.zeros((1, d_model), jnp.float32))
        ln2g.append(jnp.ones((1, d_model), jnp.float32))
        ln2b.append(jnp.zeros((1, d_model), jnp.float32))

    p["wqkv_t"] = jnp.stack(wqkv)      # (L, D, 3D) bf16
    p["bqkv"] = jnp.stack(bqkv)        # (L, 1, 3D) f32
    p["wo_t"] = jnp.stack(wo)          # (L, D, D)  bf16
    p["bo"] = jnp.stack(bo)            # (L, 1, D)  f32
    p["w1_t"] = jnp.stack(w1)          # (L, D, FF) bf16
    p["b1"] = jnp.stack(b1)            # (L, 1, FF) f32
    p["w2_t"] = jnp.stack(w2)          # (L, FF, D) bf16
    p["b2"] = jnp.stack(b2)            # (L, 1, D)  f32
    p["ln1_g"] = jnp.stack(ln1g)
    p["ln1_b"] = jnp.stack(ln1b)
    p["ln2_g"] = jnp.stack(ln2g)
    p["ln2_b"] = jnp.stack(ln2b)
    return p


def transformer_forward(src_tokens, params, *, nhead, output_size):
    # src_tokens: (B, S) int32
    B, S = src_tokens.shape
    # key padding mask (token == 0) -> additive bias, one compact (B,1,S) array
    key_bias = jnp.where(src_tokens == 0, jnp.float32(-1e30),
                         jnp.float32(0.0)).reshape(B, 1, S)
    # embedding lookup (gather stays in JAX glue); sqrt(emb_len) pre-folded
    x_emb = jnp.take(params["emb"], src_tokens, axis=0)     # (B, S, E) bf16
    logits_pad = fused_transformer_pallas(x_emb, key_bias, params, nhead=nhead)
    return logits_pad[:, :output_size]


# ----------------------------------------------------------------------------
# Main
# ----------------------------------------------------------------------------

if __name__ == "__main__":
    batch_size = 2
    max_time_step = 8
    output_size = 4
    d_model = 32
    nhead = 4
    dim_feedforward = 64
    nlayers = 2
    vocab_size = 50
    embedding_length = 16   # != d_model -> exercises embedding_projector

    root = jax.random.PRNGKey(0)
    kp, kt = jax.random.split(root)

    params = init_params(kp, vocab=vocab_size, emb_len=embedding_length,
                         d_model=d_model, nhead=nhead, dim_ff=dim_feedforward,
                         nlayers=nlayers, max_time_step=max_time_step,
                         output_size=output_size)

    # token ids in [1, vocab) plus a few explicit padding (0) positions
    src = jax.random.randint(kt, (batch_size, max_time_step), 1, vocab_size,
                             dtype=jnp.int32)
    src = src.at[0, -2:].set(0)
    src = src.at[1, -1:].set(0)

    fwd = jax.jit(functools.partial(transformer_forward, nhead=nhead,
                                    output_size=output_size))
    out = fwd(src, params)
    out = jax.block_until_ready(out)
    assert out.shape == (batch_size, output_size)
    assert bool(jnp.all(jnp.isfinite(out)))
    print("KERNEL_OK")
</pallas_src>

<mosaic_0001>
module attributes {stable_mosaic.version = 11 : i64} {
  func.func @_fused_model_kernel(%arg0: i32, %arg1: i32, %arg2: memref<2x8x16xbf16, #tpu.memory_space<vmem>>, %arg3: memref<2x1x8xf32, #tpu.memory_space<vmem>>, %arg4: memref<16x32xf32, #tpu.memory_space<vmem>>, %arg5: memref<16x32xbf16, #tpu.memory_space<vmem>>, %arg6: memref<1x32x96xbf16, #tpu.memory_space<vmem>>, %arg7: memref<1x1x96xf32, #tpu.memory_space<vmem>>, %arg8: memref<1x32x32xbf16, #tpu.memory_space<vmem>>, %arg9: memref<1x1x32xf32, #tpu.memory_space<vmem>>, %arg10: memref<1x1x32xf32, #tpu.memory_space<vmem>>, %arg11: memref<1x1x32xf32, #tpu.memory_space<vmem>>, %arg12: memref<1x32x64xbf16, #tpu.memory_space<vmem>>, %arg13: memref<1x1x64xf32, #tpu.memory_space<vmem>>, %arg14: memref<1x64x32xbf16, #tpu.memory_space<vmem>>, %arg15: memref<1x1x32xf32, #tpu.memory_space<vmem>>, %arg16: memref<1x1x32xf32, #tpu.memory_space<vmem>>, %arg17: memref<1x1x32xf32, #tpu.memory_space<vmem>>, %arg18: memref<8x1xf32, #tpu.memory_space<vmem>>, %arg19: memref<32x128xbf16, #tpu.memory_space<vmem>>, %arg20: memref<1x128xf32, #tpu.memory_space<vmem>>, %arg21: memref<2x128xf32, #tpu.memory_space<vmem>>, %arg22: memref<16x32xf32, #tpu.memory_space<vmem>>, %arg23: memref<16x32xf32, #tpu.memory_space<vmem>>) attributes {dimension_semantics = [#tpu.dimension_semantics<parallel>, #tpu.dimension_semantics<arbitrary>], iteration_bounds = array<i64: 1, 2>, scalar_prefetch = 0 : i64, scratch_operands = 2 : i64, tpu.core_type = #tpu.core_type<tc>, window_params = [{transform_indices = @transform_0, window_bounds = array<i64: 2, 8, 16>}, {transform_indices = @transform_1, window_bounds = array<i64: 2, 1, 8>}, {pipeline_mode = #tpu.pipeline_mode<synchronous>, transform_indices = @transform_2, window_bounds = array<i64: 16, 32>}, {pipeline_mode = #tpu.pipeline_mode<synchronous>, transform_indices = @transform_3, window_bounds = array<i64: 16, 32>}, {transform_indices = @transform_4, window_bounds = array<i64: 1, 32, 96>}, {transform_indices = @transform_5, window_bounds = array<i64: 1, 1, 96>}, {transform_indices = @transform_6, window_bounds = array<i64: 1, 32, 32>}, {transform_indices = @transform_7, window_bounds = array<i64: 1, 1, 32>}, {transform_indices = @transform_8, window_bounds = array<i64: 1, 1, 32>}, {transform_indices = @transform_9, window_bounds = array<i64: 1, 1, 32>}, {transform_indices = @transform_10, window_bounds = array<i64: 1, 32, 64>}, {transform_indices = @transform_11, window_bounds = array<i64: 1, 1, 64>}, {transform_indices = @transform_12, window_bounds = array<i64: 1, 64, 32>}, {transform_indices = @transform_13, window_bounds = array<i64: 1, 1, 32>}, {transform_indices = @transform_14, window_bounds = array<i64: 1, 1, 32>}, {transform_indices = @transform_15, window_bounds = array<i64: 1, 1, 32>}, {pipeline_mode = #tpu.pipeline_mode<synchronous>, transform_indices = @transform_16, window_bounds = array<i64: 8, 1>}, {pipeline_mode = #tpu.pipeline_mode<synchronous>, transform_indices = @transform_17, window_bounds = array<i64: 32, 128>}, {pipeline_mode = #tpu.pipeline_mode<synchronous>, transform_indices = @transform_18, window_bounds = array<i64: 1, 128>}, {transform_indices = @transform_19, window_bounds = array<i64: 2, 128>}]} {
    %c0_i32 = arith.constant 0 : i32
    %0 = arith.cmpi eq, %arg1, %c0_i32 : i32
    %1 = arith.extui %0 : i1 to i32
    %c0_i32_0 = arith.constant 0 : i32
    %2 = arith.cmpi ne, %1, %c0_i32_0 : i32
    scf.if %2 {
      %c0_107 = arith.constant 0 : index
      %c0_108 = arith.constant 0 : index
      %c0_109 = arith.constant 0 : index
      %273 = vector.load %arg2[%c0_107, %c0_108, %c0_109] : memref<2x8x16xbf16, #tpu.memory_space<vmem>>, vector<2x8x16xbf16>
      %274 = vector.shape_cast %273 : vector<2x8x16xbf16> to vector<16x16xbf16>
      %c0_110 = arith.constant 0 : index
      %c0_111 = arith.constant 0 : index
      %275 = vector.load %arg5[%c0_110, %c0_111] : memref<16x32xbf16, #tpu.memory_space<vmem>>, vector<16x32xbf16>
      %cst_112 = arith.constant dense<0.000000e+00> : vector<16x32xf32>
      %276 = tpu.matmul %274, %275, %cst_112 {dimension_numbers = #tpu.dot_dimension_numbers<[1], [0], [0], [1], [0, 0, 1, 1], [], []>} : vector<16x16xbf16>, vector<16x32xbf16>, vector<16x32xf32> -> vector<16x32xf32>
      %c0_113 = arith.constant 0 : index
      %c0_114 = arith.constant 0 : index
      %277 = vector.load %arg4[%c0_113, %c0_114] : memref<16x32xf32, #tpu.memory_space<vmem>>, vector<16x32xf32>
      %278 = arith.addf %276, %277 : vector<16x32xf32>
      %c0_115 = arith.constant 0 : index
      %c0_116 = arith.constant 0 : index
      %279 = vector.load %arg22[%c0_115, %c0_116] : memref<16x32xf32, #tpu.memory_space<vmem>>, vector<16x32xf32>
      tpu.vector_store %arg22[%c0_115, %c0_116], %278 {strides = array<i32>} : memref<16x32xf32, #tpu.memory_space<vmem>>, vector<16x32xf32>,
    } else {
    }
    %c0 = arith.constant 0 : index
    %c0_1 = arith.constant 0 : index
    %3 = vector.load %arg22[%c0, %c0_1] : memref<16x32xf32, #tpu.memory_space<vmem>>, vector<16x32xf32>
    %4 = arith.truncf %3 : vector<16x32xf32> to vector<16x32xbf16>
    %c0_2 = arith.constant 0 : index
    %c0_3 = arith.constant 0 : index
    %c0_4 = arith.constant 0 : index
    %5 = vector.load %arg6[%c0_2, %c0_3, %c0_4] : memref<1x32x96xbf16, #tpu.memory_space<vmem>>, vector<1x32x96xbf16>
    %6 = vector.shape_cast %5 : vector<1x32x96xbf16> to vector<32x96xbf16>
    %cst = arith.constant dense<0.000000e+00> : vector<16x96xf32>
    %7 = tpu.matmul %4, %6, %cst {dimension_numbers = #tpu.dot_dimension_numbers<[1], [0], [0], [1], [0, 0, 1, 1], [], []>} : vector<16x32xbf16>, vector<32x96xbf16>, vector<16x96xf32> -> vector<16x96xf32>
    %c0_5 = arith.constant 0 : index
    %c0_6 = arith.constant 0 : index
    %c0_7 = arith.constant 0 : index
    %8 = vector.load %arg7[%c0_5, %c0_6, %c0_7] : memref<1x1x96xf32, #tpu.memory_space<vmem>>, vector<1x1x96xf32>
    %9 = vector.shape_cast %8 : vector<1x1x96xf32> to vector<1x96xf32>
    %10 = vector.broadcast %9 : vector<1x96xf32> to vector<16x96xf32>
    %11 = arith.addf %7, %10 : vector<16x96xf32>
    %c0_8 = arith.constant 0 : index
    %c0_9 = arith.constant 0 : index
    %c0_10 = arith.constant 0 : index
    %12 = vector.load %arg3[%c0_8, %c0_9, %c0_10] : memref<2x1x8xf32, #tpu.memory_space<vmem>>, vector<1x1x8xf32>
    %13 = vector.shape_cast %12 : vector<1x1x8xf32> to vector<1x8xf32>
    %14 = vector.shape_cast %13 : vector<1x8xf32> to vector<1x8xf32>
    %15 = vector.broadcast %14 : vector<1x8xf32> to vector<8x8xf32>
    %16 = vector.extract_strided_slice %11 {offsets = [0, 0], sizes = [8, 8], strides = [1, 1]} : vector<16x96xf32> to vector<8x8xf32>
    %17 = arith.truncf %16 : vector<8x8xf32> to vector<8x8xbf16>
    %18 = vector.extract_strided_slice %11 {offsets = [0, 32], sizes = [8, 8], strides = [1, 1]} : vector<16x96xf32> to vector<8x8xf32>
    %19 = arith.truncf %18 : vector<8x8xf32> to vector<8x8xbf16>
    %20 = vector.extract_strided_slice %11 {offsets = [0, 64], sizes = [8, 8], strides = [1, 1]} : vector<16x96xf32> to vector<8x8xf32>
    %21 = arith.truncf %20 : vector<8x8xf32> to vector<8x8xbf16>
    %cst_11 = arith.constant dense<0.000000e+00> : vector<8x8xf32>
    %22 = tpu.matmul %17, %19, %cst_11 {dimension_numbers = #tpu.dot_dimension_numbers<[1], [1], [0], [0], [0, 0, 1, 0], [], []>} : vector<8x8xbf16>, vector<8x8xbf16>, vector<8x8xf32> -> vector<8x8xf32>
    %23 = arith.addf %22, %15 : vector<8x8xf32>
    %cst_12 = arith.constant dense<0xFF800000> : vector<8xf32>
    %24 = vector.multi_reduction <maximumf>, %23, %cst_12 [1] : vector<8x8xf32> to vector<8xf32>
    %25 = vector.shape_cast %24 : vector<8xf32> to vector<8x1xf32>
    %26 = vector.broadcast %25 : vector<8x1xf32> to vector<8x8xf32>
    %27 = arith.subf %23, %26 : vector<8x8xf32>
    %28 = math.exp %27 : vector<8x8xf32>
    %cst_13 = arith.constant dense<0.000000e+00> : vector<8xf32>
    %29 = vector.multi_reduction <add>, %28, %cst_13 [1] : vector<8x8xf32> to vector<8xf32>
    %30 = vector.shape_cast %29 : vector<8xf32> to vector<8x1xf32>
    %31 = tpu.reciprocal %30 {approx = true} : vector<8x1xf32> -> vector<8x1xf32>
    %32 = vector.broadcast %31 : vector<8x1xf32> to vector<8x8xf32>
    %33 = arith.mulf %28, %32 : vector<8x8xf32>
    %34 = arith.truncf %33 : vector<8x8xf32> to vector<8x8xbf16>
    %cst_14 = arith.constant dense<0.000000e+00> : vector<8x8xf32>
    %35 = tpu.matmul %34, %21, %cst_14 {dimension_numbers = #tpu.dot_dimension_numbers<[1], [0], [0], [1], [0, 0, 1, 1], [], []>} : vector<8x8xbf16>, vector<8x8xbf16>, vector<8x8xf32> -> vector<8x8xf32>
    %c0_15 = arith.constant 0 : index
    %c0_16 = arith.constant 0 : index
    %36 = vector.load %arg23[%c0_15, %c0_16] : memref<16x32xf32, #tpu.memory_space<vmem>>, vector<8x8xf32>
    tpu.vector_store %arg23[%c0_15, %c0_16], %35 {strides = array<i32>} : memref<16x32xf32, #tpu.memory_space<vmem>>, vector<8x8xf32>,
    %37 = vector.extract_strided_slice %11 {offsets = [0, 8], sizes = [8, 8], strides = [1, 1]} : vector<16x96xf32> to vector<8x8xf32>
    %38 = arith.truncf %37 : vector<8x8xf32> to vector<8x8xbf16>
    %39 = vector.extract_strided_slice %11 {offsets = [0, 40], sizes = [8, 8], strides = [1, 1]} : vector<16x96xf32> to vector<8x8xf32>
    %40 = arith.truncf %39 : vector<8x8xf32> to vector<8x8xbf16>
    %41 = vector.extract_strided_slice %11 {offsets = [0, 72], sizes = [8, 8], strides = [1, 1]} : vector<16x96xf32> to vector<8x8xf32>
    %42 = arith.truncf %41 : vector<8x8xf32> to vector<8x8xbf16>
    %cst_17 = arith.constant dense<0.000000e+00> : vector<8x8xf32>
    %43 = tpu.matmul %38, %40, %cst_17 {dimension_numbers = #tpu.dot_dimension_numbers<[1], [1], [0], [0], [0, 0, 1, 0], [], []>} : vector<8x8xbf16>, vector<8x8xbf16>, vector<8x8xf32> -> vector<8x8xf32>
    %44 = arith.addf %43, %15 : vector<8x8xf32>
    %cst_18 = arith.constant dense<0xFF800000> : vector<8xf32>
    %45 = vector.multi_reduction <maximumf>, %44, %cst_18 [1] : vector<8x8xf32> to vector<8xf32>
    %46 = vector.shape_cast %45 : vector<8xf32> to vector<8x1xf32>
    %47 = vector.broadcast %46 : vector<8x1xf32> to vector<8x8xf32>
    %48 = arith.subf %44, %47 : vector<8x8xf32>
    %49 = math.exp %48 : vector<8x8xf32>
    %cst_19 = arith.constant dense<0.000000e+00> : vector<8xf32>
    %50 = vector.multi_reduction <add>, %49, %cst_19 [1] : vector<8x8xf32> to vector<8xf32>
    %51 = vector.shape_cast %50 : vector<8xf32> to vector<8x1xf32>
    %52 = tpu.reciprocal %51 {approx = true} : vector<8x1xf32> -> vector<8x1xf32>
    %53 = vector.broadcast %52 : vector<8x1xf32> to vector<8x8xf32>
    %54 = arith.mulf %49, %53 : vector<8x8xf32>
    %55 = arith.truncf %54 : vector<8x8xf32> to vector<8x8xbf16>
    %cst_20 = arith.constant dense<0.000000e+00> : vector<8x8xf32>
    %56 = tpu.matmul %55, %42, %cst_20 {dimension_numbers = #tpu.dot_dimension_numbers<[1], [0], [0], [1], [0, 0, 1, 1], [], []>} : vector<8x8xbf16>, vector<8x8xbf16>, vector<8x8xf32> -> vector<8x8xf32>
    %c0_21 = arith.constant 0 : index
    %c8 = arith.constant 8 : index
    %57 = vector.load %arg23[%c0_21, %c8] : memref<16x32xf32, #tpu.memory_space<vmem>>, vector<8x8xf32>
    tpu.vector_store %arg23[%c0_21, %c8], %56 {strides = array<i32>} : memref<16x32xf32, #tpu.memory_space<vmem>>, vector<8x8xf32>,
    %58 = vector.extract_strided_slice %11 {offsets = [0, 16], sizes = [8, 8], strides = [1, 1]} : vector<16x96xf32> to vector<8x8xf32>
    %59 = arith.truncf %58 : vector<8x8xf32> to vector<8x8xbf16>
    %60 = vector.extract_strided_slice %11 {offsets = [0, 48], sizes = [8, 8], strides = [1, 1]} : vector<16x96xf32> to vector<8x8xf32>
    %61 = arith.truncf %60 : vector<8x8xf32> to vector<8x8xbf16>
    %62 = vector.extract_strided_slice %11 {offsets = [0, 80], sizes = [8, 8], strides = [1, 1]} : vector<16x96xf32> to vector<8x8xf32>
    %63 = arith.truncf %62 : vector<8x8xf32> to vector<8x8xbf16>
    %cst_22 = arith.constant dense<0.000000e+00> : vector<8x8xf32>
    %64 = tpu.matmul %59, %61, %cst_22 {dimension_numbers = #tpu.dot_dimension_numbers<[1], [1], [0], [0], [0, 0, 1, 0], [], []>} : vector<8x8xbf16>, vector<8x8xbf16>, vector<8x8xf32> -> vector<8x8xf32>
    %65 = arith.addf %64, %15 : vector<8x8xf32>
    %cst_23 = arith.constant dense<0xFF800000> : vector<8xf32>
    %66 = vector.multi_reduction <maximumf>, %65, %cst_23 [1] : vector<8x8xf32> to vector<8xf32>
    %67 = vector.shape_cast %66 : vector<8xf32> to vector<8x1xf32>
    %68 = vector.broadcast %67 : vector<8x1xf32> to vector<8x8xf32>
    %69 = arith.subf %65, %68 : vector<8x8xf32>
    %70 = math.exp %69 : vector<8x8xf32>
    %cst_24 = arith.constant dense<0.000000e+00> : vector<8xf32>
    %71 = vector.multi_reduction <add>, %70, %cst_24 [1] : vector<8x8xf32> to vector<8xf32>
    %72 = vector.shape_cast %71 : vector<8xf32> to vector<8x1xf32>
    %73 = tpu.reciprocal %72 {approx = true} : vector<8x1xf32> -> vector<8x1xf32>
    %74 = vector.broadcast %73 : vector<8x1xf32> to vector<8x8xf32>
    %75 = arith.mulf %70, %74 : vector<8x8xf32>
    %76 = arith.truncf %75 : vector<8x8xf32> to vector<8x8xbf16>
    %cst_25 = arith.constant dense<0.000000e+00> : vector<8x8xf32>
    %77 = tpu.matmul %76, %63, %cst_25 {dimension_numbers = #tpu.dot_dimension_numbers<[1], [0], [0], [1], [0, 0, 1, 1], [], []>} : vector<8x8xbf16>, vector<8x8xbf16>, vector<8x8xf32> -> vector<8x8xf32>
    %c0_26 = arith.constant 0 : index
    %c16 = arith.constant 16 : index
    %78 = vector.load %arg23[%c0_26, %c16] : memref<16x32xf32, #tpu.memory_space<vmem>>, vector<8x8xf32>
    tpu.vector_store %arg23[%c0_26, %c16], %77 {strides = array<i32>} : memref<16x32xf32, #tpu.memory_space<vmem>>, vector<8x8xf32>,
    %79 = vector.extract_strided_slice %11 {offsets = [0, 24], sizes = [8, 8], strides = [1, 1]} : vector<16x96xf32> to vector<8x8xf32>
    %80 = arith.truncf %79 : vector<8x8xf32> to vector<8x8xbf16>
    %81 = vector.extract_strided_slice %11 {offsets = [0, 56], sizes = [8, 8], strides = [1, 1]} : vector<16x96xf32> to vector<8x8xf32>
    %82 = arith.truncf %81 : vector<8x8xf32> to vector<8x8xbf16>
    %83 = vector.extract_strided_slice %11 {offsets = [0, 88], sizes = [8, 8], strides = [1, 1]} : vector<16x96xf32> to vector<8x8xf32>
    %84 = arith.truncf %83 : vector<8x8xf32> to vector<8x8xbf16>
    %cst_27 = arith.constant dense<0.000000e+00> : vector<8x8xf32>
    %85 = tpu.matmul %80, %82, %cst_27 {dimension_numbers = #tpu.dot_dimension_numbers<[1], [1], [0], [0], [0, 0, 1, 0], [], []>} : vector<8x8xbf16>, vector<8x8xbf16>, vector<8x8xf32> -> vector<8x8xf32>
    %86 = arith.addf %85, %15 : vector<8x8xf32>
    %cst_28 = arith.constant dense<0xFF800000> : vector<8xf32>
    %87 = vector.multi_reduction <maximumf>, %86, %cst_28 [1] : vector<8x8xf32> to vector<8xf32>
    %88 = vector.shape_cast %87 : vector<8xf32> to vector<8x1xf32>
    %89 = vector.broadcast %88 : vector<8x1xf32> to vector<8x8xf32>
    %90 = arith.subf %86, %89 : vector<8x8xf32>
    %91 = math.exp %90 : vector<8x8xf32>
    %cst_29 = arith.constant dense<0.000000e+00> : vector<8xf32>
    %92 = vector.multi_reduction <add>, %91, %cst_29 [1] : vector<8x8xf32> to vector<8xf32>
    %93 = vector.shape_cast %92 : vector<8xf32> to vector<8x1xf32>
    %94 = tpu.reciprocal %93 {approx = true} : vector<8x1xf32> -> vector<8x1xf32>
    %95 = vector.broadcast %94 : vector<8x1xf32> to vector<8x8xf32>
    %96 = arith.mulf %91, %95 : vector<8x8xf32>
    %97 = arith.truncf %96 : vector<8x8xf32> to vector<8x8xbf16>
    %cst_30 = arith.constant dense<0.000000e+00> : vector<8x8xf32>
    %98 = tpu.matmul %97, %84, %cst_30 {dimension_numbers = #tpu.dot_dimension_numbers<[1], [0], [0], [1], [0, 0, 1, 1], [], []>} : vector<8x8xbf16>, vector<8x8xbf16>, vector<8x8xf32> -> vector<8x8xf32>
    %c0_31 = arith.constant 0 : index
    %c24 = arith.constant 24 : index
    %99 = vector.load %arg23[%c0_31, %c24] : memref<16x32xf32, #tpu.memory_space<vmem>>, vector<8x8xf32>
    tpu.vector_store %arg23[%c0_31, %c24], %98 {strides = array<i32>} : memref<16x32xf32, #tpu.memory_space<vmem>>, vector<8x8xf32>,
    %c1 = arith.constant 1 : index
    %c0_32 = arith.constant 0 : index
    %c0_33 = arith.constant 0 : index
    %100 = vector.load %arg3[%c1, %c0_32, %c0_33] : memref<2x1x8xf32, #tpu.memory_space<vmem>>, vector<1x1x8xf32>
    %101 = vector.shape_cast %100 : vector<1x1x8xf32> to vector<1x8xf32>
    %102 = vector.shape_cast %101 : vector<1x8xf32> to vector<1x8xf32>
    %103 = vector.broadcast %102 : vector<1x8xf32> to vector<8x8xf32>
    %104 = vector.extract_strided_slice %11 {offsets = [8, 0], sizes = [8, 8], strides = [1, 1]} : vector<16x96xf32> to vector<8x8xf32>
    %105 = arith.truncf %104 : vector<8x8xf32> to vector<8x8xbf16>
    %106 = vector.extract_strided_slice %11 {offsets = [8, 32], sizes = [8, 8], strides = [1, 1]} : vector<16x96xf32> to vector<8x8xf32>
    %107 = arith.truncf %106 : vector<8x8xf32> to vector<8x8xbf16>
    %108 = vector.extract_strided_slice %11 {offsets = [8, 64], sizes = [8, 8], strides = [1, 1]} : vector<16x96xf32> to vector<8x8xf32>
    %109 = arith.truncf %108 : vector<8x8xf32> to vector<8x8xbf16>
    %cst_34 = arith.constant dense<0.000000e+00> : vector<8x8xf32>
    %110 = tpu.matmul %105, %107, %cst_34 {dimension_numbers = #tpu.dot_dimension_numbers<[1], [1], [0], [0], [0, 0, 1, 0], [], []>} : vector<8x8xbf16>, vector<8x8xbf16>, vector<8x8xf32> -> vector<8x8xf32>
    %111 = arith.addf %110, %103 : vector<8x8xf32>
    %cst_35 = arith.constant dense<0xFF800000> : vector<8xf32>
    %112 = vector.multi_reduction <maximumf>, %111, %cst_35 [1] : vector<8x8xf32> to vector<8xf32>
    %113 = vector.shape_cast %112 : vector<8xf32> to vector<8x1xf32>
    %114 = vector.broadcast %113 : vector<8x1xf32> to vector<8x8xf32>
    %115 = arith.subf %111, %114 : vector<8x8xf32>
    %116 = math.exp %115 : vector<8x8xf32>
    %cst_36 = arith.constant dense<0.000000e+00> : vector<8xf32>
    %117 = vector.multi_reduction <add>, %116, %cst_36 [1] : vector<8x8xf32> to vector<8xf32>
    %118 = vector.shape_cast %117 : vector<8xf32> to vector<8x1xf32>
    %119 = tpu.reciprocal %118 {approx = true} : vector<8x1xf32> -> vector<8x1xf32>
    %120 = vector.broadcast %119 : vector<8x1xf32> to vector<8x8xf32>
    %121 = arith.mulf %116, %120 : vector<8x8xf32>
    %122 = arith.truncf %121 : vector<8x8xf32> to vector<8x8xbf16>
    %cst_37 = arith.constant dense<0.000000e+00> : vector<8x8xf32>
    %123 = tpu.matmul %122, %109, %cst_37 {dimension_numbers = #tpu.dot_dimension_numbers<[1], [0], [0], [1], [0, 0, 1, 1], [], []>} : vector<8x8xbf16>, vector<8x8xbf16>, vector<8x8xf32> -> vector<8x8xf32>
    %c8_38 = arith.constant 8 : index
    %c0_39 = arith.constant 0 : index
    %124 = vector.load %arg23[%c8_38, %c0_39] : memref<16x32xf32, #tpu.memory_space<vmem>>, vector<8x8xf32>
    tpu.vector_store %arg23[%c8_38, %c0_39], %123 {strides = array<i32>} : memref<16x32xf32, #tpu.memory_space<vmem>>, vector<8x8xf32>,
    %125 = vector.extract_strided_slice %11 {offsets = [8, 8], sizes = [8, 8], strides = [1, 1]} : vector<16x96xf32> to vector<8x8xf32>
    %126 = arith.truncf %125 : vector<8x8xf32> to vector<8x8xbf16>
    %127 = vector.extract_strided_slice %11 {offsets = [8, 40], sizes = [8, 8], strides = [1, 1]} : vector<16x96xf32> to vector<8x8xf32>
    %128 = arith.truncf %127 : vector<8x8xf32> to vector<8x8xbf16>
    %129 = vector.extract_strided_slice %11 {offsets = [8, 72], sizes = [8, 8], strides = [1, 1]} : vector<16x96xf32> to vector<8x8xf32>
    %130 = arith.truncf %129 : vector<8x8xf32> to vector<8x8xbf16>
    %cst_40 = arith.constant dense<0.000000e+00> : vector<8x8xf32>
    %131 = tpu.matmul %126, %128, %cst_40 {dimension_numbers = #tpu.dot_dimension_numbers<[1], [1], [0], [0], [0, 0, 1, 0], [], []>} : vector<8x8xbf16>, vector<8x8xbf16>, vector<8x8xf32> -> vector<8x8xf32>
    %132 = arith.addf %131, %103 : vector<8x8xf32>
    %cst_41 = arith.constant dense<0xFF800000> : vector<8xf32>
    %133 = vector.multi_reduction <maximumf>, %132, %cst_41 [1] : vector<8x8xf32> to vector<8xf32>
    %134 = vector.shape_cast %133 : vector<8xf32> to vector<8x1xf32>
    %135 = vector.broadcast %134 : vector<8x1xf32> to vector<8x8xf32>
    %136 = arith.subf %132, %135 : vector<8x8xf32>
    %137 = math.exp %136 : vector<8x8xf32>
    %cst_42 = arith.constant dense<0.000000e+00> : vector<8xf32>
    %138 = vector.multi_reduction <add>, %137, %cst_42 [1] : vector<8x8xf32> to vector<8xf32>
    %139 = vector.shape_cast %138 : vector<8xf32> to vector<8x1xf32>
    %140 = tpu.reciprocal %139 {approx = true} : vector<8x1xf32> -> vector<8x1xf32>
    %141 = vector.broadcast %140 : vector<8x1xf32> to vector<8x8xf32>
    %142 = arith.mulf %137, %141 : vector<8x8xf32>
    %143 = arith.truncf %142 : vector<8x8xf32> to vector<8x8xbf16>
    %cst_43 = arith.constant dense<0.000000e+00> : vector<8x8xf32>
    %144 = tpu.matmul %143, %130, %cst_43 {dimension_numbers = #tpu.dot_dimension_numbers<[1], [0], [0], [1], [0, 0, 1, 1], [], []>} : vector<8x8xbf16>, vector<8x8xbf16>, vector<8x8xf32> -> vector<8x8xf32>
    %c8_44 = arith.constant 8 : index
    %c8_45 = arith.constant 8 : index
    %145 = vector.load %arg23[%c8_44, %c8_45] : memref<16x32xf32, #tpu.memory_space<vmem>>, vector<8x8xf32>
    tpu.vector_store %arg23[%c8_44, %c8_45], %144 {strides = array<i32>} : memref<16x32xf32, #tpu.memory_space<vmem>>, vector<8x8xf32>,
    %146 = vector.extract_strided_slice %11 {offsets = [8, 16], sizes = [8, 8], strides = [1, 1]} : vector<16x96xf32> to vector<8x8xf32>
    %147 = arith.truncf %146 : vector<8x8xf32> to vector<8x8xbf16>
    %148 = vector.extract_strided_slice %11 {offsets = [8, 48], sizes = [8, 8], strides = [1, 1]} : vector<16x96xf32> to vector<8x8xf32>
    %149 = arith.truncf %148 : vector<8x8xf32> to vector<8x8xbf16>
    %150 = vector.extract_strided_slice %11 {offsets = [8, 80], sizes = [8, 8], strides = [1, 1]} : vector<16x96xf32> to vector<8x8xf32>
    %151 = arith.truncf %150 : vector<8x8xf32> to vector<8x8xbf16>
    %cst_46 = arith.constant dense<0.000000e+00> : vector<8x8xf32>
    %152 = tpu.matmul %147, %149, %cst_46 {dimension_numbers = #tpu.dot_dimension_numbers<[1], [1], [0], [0], [0, 0, 1, 0], [], []>} : vector<8x8xbf16>, vector<8x8xbf16>, vector<8x8xf32> -> vector<8x8xf32>
    %153 = arith.addf %152, %103 : vector<8x8xf32>
    %cst_47 = arith.constant dense<0xFF800000> : vector<8xf32>
    %154 = vector.multi_reduction <maximumf>, %153, %cst_47 [1] : vector<8x8xf32> to vector<8xf32>
    %155 = vector.shape_cast %154 : vector<8xf32> to vector<8x1xf32>
    %156 = vector.broadcast %155 : vector<8x1xf32> to vector<8x8xf32>
    %157 = arith.subf %153, %156 : vector<8x8xf32>
    %158 = math.exp %157 : vector<8x8xf32>
    %cst_48 = arith.constant dense<0.000000e+00> : vector<8xf32>
    %159 = vector.multi_reduction <add>, %158, %cst_48 [1] : vector<8x8xf32> to vector<8xf32>
    %160 = vector.shape_cast %159 : vector<8xf32> to vector<8x1xf32>
    %161 = tpu.reciprocal %160 {approx = true} : vector<8x1xf32> -> vector<8x1xf32>
    %162 = vector.broadcast %161 : vector<8x1xf32> to vector<8x8xf32>
    %163 = arith.mulf %158, %162 : vector<8x8xf32>
    %164 = arith.truncf %163 : vector<8x8xf32> to vector<8x8xbf16>
    %cst_49 = arith.constant dense<0.000000e+00> : vector<8x8xf32>
    %165 = tpu.matmul %164, %151, %cst_49 {dimension_numbers = #tpu.dot_dimension_numbers<[1], [0], [0], [1], [0, 0, 1, 1], [], []>} : vector<8x8xbf16>, vector<8x8xbf16>, vector<8x8xf32> -> vector<8x8xf32>
    %c8_50 = arith.constant 8 : index
    %c16_51 = arith.constant 16 : index
    %166 = vector.load %arg23[%c8_50, %c16_51] : memref<16x32xf32, #tpu.memory_space<vmem>>, vector<8x8xf32>
    tpu.vector_store %arg23[%c8_50, %c16_51], %165 {strides = array<i32>} : memref<16x32xf32, #tpu.memory_space<vmem>>, vector<8x8xf32>,
    %167 = vector.extract_strided_slice %11 {offsets = [8, 24], sizes = [8, 8], strides = [1, 1]} : vector<16x96xf32> to vector<8x8xf32>
    %168 = arith.truncf %167 : vector<8x8xf32> to vector<8x8xbf16>
    %169 = vector.extract_strided_slice %11 {offsets = [8, 56], sizes = [8, 8], strides = [1, 1]} : vector<16x96xf32> to vector<8x8xf32>
    %170 = arith.truncf %169 : vector<8x8xf32> to vector<8x8xbf16>
    %171 = vector.extract_strided_slice %11 {offsets = [8, 88], sizes = [8, 8], strides = [1, 1]} : vector<16x96xf32> to vector<8x8xf32>
    %172 = arith.truncf %171 : vector<8x8xf32> to vector<8x8xbf16>
    %cst_52 = arith.constant dense<0.000000e+00> : vector<8x8xf32>
    %173 = tpu.matmul %168, %170, %cst_52 {dimension_numbers = #tpu.dot_dimension_numbers<[1], [1], [0], [0], [0, 0, 1, 0], [], []>} : vector<8x8xbf16>, vector<8x8xbf16>, vector<8x8xf32> -> vector<8x8xf32>
    %174 = arith.addf %173, %103 : vector<8x8xf32>
    %cst_53 = arith.constant dense<0xFF800000> : vector<8xf32>
    %175 = vector.multi_reduction <maximumf>, %174, %cst_53 [1] : vector<8x8xf32> to vector<8xf32>
    %176 = vector.shape_cast %175 : vector<8xf32> to vector<8x1xf32>
    %177 = vector.broadcast %176 : vector<8x1xf32> to vector<8x8xf32>
    %178 = arith.subf %174, %177 : vector<8x8xf32>
    %179 = math.exp %178 : vector<8x8xf32>
    %cst_54 = arith.constant dense<0.000000e+00> : vector<8xf32>
    %180 = vector.multi_reduction <add>, %179, %cst_54 [1] : vector<8x8xf32> to vector<8xf32>
    %181 = vector.shape_cast %180 : vector<8xf32> to vector<8x1xf32>
    %182 = tpu.reciprocal %181 {approx = true} : vector<8x1xf32> -> vector<8x1xf32>
    %183 = vector.broadcast %182 : vector<8x1xf32> to vector<8x8xf32>
    %184 = arith.mulf %179, %183 : vector<8x8xf32>
    %185 = arith.truncf %184 : vector<8x8xf32> to vector<8x8xbf16>
    %cst_55 = arith.constant dense<0.000000e+00> : vector<8x8xf32>
    %186 = tpu.matmul %185, %172, %cst_55 {dimension_numbers = #tpu.dot_dimension_numbers<[1], [0], [0], [1], [0, 0, 1, 1], [], []>} : vector<8x8xbf16>, vector<8x8xbf16>, vector<8x8xf32> -> vector<8x8xf32>
    %c8_56 = arith.constant 8 : index
    %c24_57 = arith.constant 24 : index
    %187 = vector.load %arg23[%c8_56, %c24_57] : memref<16x32xf32, #tpu.memory_space<vmem>>, vector<8x8xf32>
    tpu.vector_store %arg23[%c8_56, %c24_57], %186 {strides = array<i32>} : memref<16x32xf32, #tpu.memory_space<vmem>>, vector<8x8xf32>,
    %c0_58 = arith.constant 0 : index
    %c0_59 = arith.constant 0 : index
    %188 = vector.load %arg23[%c0_58, %c0_59] : memref<16x32xf32, #tpu.memory_space<vmem>>, vector<16x32xf32>
    %189 = arith.truncf %188 : vector<16x32xf32> to vector<16x32xbf16>
    %c0_60 = arith.constant 0 : index
    %c0_61 = arith.constant 0 : index
    %c0_62 = arith.constant 0 : index
    %190 = vector.load %arg8[%c0_60, %c0_61, %c0_62] : memref<1x32x32xbf16, #tpu.memory_space<vmem>>, vector<1x32x32xbf16>
    %191 = vector.shape_cast %190 : vector<1x32x32xbf16> to vector<32x32xbf16>
    %cst_63 = arith.constant dense<0.000000e+00> : vector<16x32xf32>
    %192 = tpu.matmul %189, %191, %cst_63 {dimension_numbers = #tpu.dot_dimension_numbers<[1], [0], [0], [1], [0, 0, 1, 1], [], []>} : vector<16x32xbf16>, vector<32x32xbf16>, vector<16x32xf32> -> vector<16x32xf32>
    %c0_64 = arith.constant 0 : index
    %c0_65 = arith.constant 0 : index
    %c0_66 = arith.constant 0 : index
    %193 = vector.load %arg9[%c0_64, %c0_65, %c0_66] : memref<1x1x32xf32, #tpu.memory_space<vmem>>, vector<1x1x32xf32>
    %194 = vector.shape_cast %193 : vector<1x1x32xf32> to vector<1x32xf32>
    %195 = vector.broadcast %194 : vector<1x32xf32> to vector<16x32xf32>
    %196 = arith.addf %192, %195 : vector<16x32xf32>
    %197 = arith.addf %196, %3 : vector<16x32xf32>
    %cst_67 = arith.constant dense<0.000000e+00> : vector<16xf32>
    %198 = vector.multi_reduction <add>, %197, %cst_67 [1] : vector<16x32xf32> to vector<16xf32>
    %199 = vector.shape_cast %198 : vector<16xf32> to vector<16x1xf32>
    %cst_68 = arith.constant 3.200000e+01 : f32
    %200 = vector.broadcast %cst_68 : f32 to vector<16x1xf32>
    %201 = arith.divf %199, %200 : vector<16x1xf32>
    %202 = vector.broadcast %201 : vector<16x1xf32> to vector<16x32xf32>
    %203 = arith.subf %197, %202 : vector<16x32xf32>
    %204 = arith.mulf %203, %203 : vector<16x32xf32>
    %cst_69 = arith.constant dense<0.000000e+00> : vector<16xf32>
    %205 = vector.multi_reduction <add>, %204, %cst_69 [1] : vector<16x32xf32> to vector<16xf32>
    %206 = vector.shape_cast %205 : vector<16xf32> to vector<16x1xf32>
    %cst_70 = arith.constant 3.200000e+01 : f32
    %207 = vector.broadcast %cst_70 : f32 to vector<16x1xf32>
    %208 = arith.divf %206, %207 : vector<16x1xf32>
    %209 = vector.broadcast %201 : vector<16x1xf32> to vector<16x32xf32>
    %210 = arith.subf %197, %209 : vector<16x32xf32>
    %cst_71 = arith.constant 9.99999974E-6 : f32
    %211 = vector.broadcast %cst_71 : f32 to vector<16x1xf32>
    %212 = arith.addf %208, %211 : vector<16x1xf32>
    %213 = math.rsqrt %212 : vector<16x1xf32>
    %214 = vector.broadcast %213 : vector<16x1xf32> to vector<16x32xf32>
    %215 = arith.mulf %210, %214 : vector<16x32xf32>
    %c0_72 = arith.constant 0 : index
    %c0_73 = arith.constant 0 : index
    %c0_74 = arith.constant 0 : index
    %216 = vector.load %arg10[%c0_72, %c0_73, %c0_74] : memref<1x1x32xf32, #tpu.memory_space<vmem>>, vector<1x1x32xf32>
    %217 = vector.shape_cast %216 : vector<1x1x32xf32> to vector<1x32xf32>
    %218 = vector.broadcast %217 : vector<1x32xf32> to vector<16x32xf32>
    %219 = arith.mulf %215, %218 : vector<16x32xf32>
    %c0_75 = arith.constant 0 : index
    %c0_76 = arith.constant 0 : index
    %c0_77 = arith.constant 0 : index
    %220 = vector.load %arg11[%c0_75, %c0_76, %c0_77] : memref<1x1x32xf32, #tpu.memory_space<vmem>>, vector<1x1x32xf32>
    %221 = vector.shape_cast %220 : vector<1x1x32xf32> to vector<1x32xf32>
    %222 = vector.broadcast %221 : vector<1x32xf32> to vector<16x32xf32>
    %223 = arith.addf %219, %222 : vector<16x32xf32>
    %224 = arith.truncf %223 : vector<16x32xf32> to vector<16x32xbf16>
    %c0_78 = arith.constant 0 : index
    %c0_79 = arith.constant 0 : index
    %c0_80 = arith.constant 0 : index
    %225 = vector.load %arg12[%c0_78, %c0_79, %c0_80] : memref<1x32x64xbf16, #tpu.memory_space<vmem>>, vector<1x32x64xbf16>
    %226 = vector.shape_cast %225 : vector<1x32x64xbf16> to vector<32x64xbf16>
    %cst_81 = arith.constant dense<0.000000e+00> : vector<16x64xf32>
    %227 = tpu.matmul %224, %226, %cst_81 {dimension_numbers = #tpu.dot_dimension_numbers<[1], [0], [0], [1], [0, 0, 1, 1], [], []>} : vector<16x32xbf16>, vector<32x64xbf16>, vector<16x64xf32> -> vector<16x64xf32>
    %c0_82 = arith.constant 0 : index
    %c0_83 = arith.constant 0 : index
    %c0_84 = arith.constant 0 : index
    %228 = vector.load %arg13[%c0_82, %c0_83, %c0_84] : memref<1x1x64xf32, #tpu.memory_space<vmem>>, vector<1x1x64xf32>
    %229 = vector.shape_cast %228 : vector<1x1x64xf32> to vector<1x64xf32>
    %230 = vector.broadcast %229 : vector<1x64xf32> to vector<16x64xf32>
    %231 = arith.addf %227, %230 : vector<16x64xf32>
    %cst_85 = arith.constant 0.000000e+00 : f32
    %232 = vector.broadcast %cst_85 : f32 to vector<16x64xf32>
    %233 = arith.maximumf %231, %232 : vector<16x64xf32>
    %234 = arith.truncf %233 : vector<16x64xf32> to vector<16x64xbf16>
    %c0_86 = arith.constant 0 : index
    %c0_87 = arith.constant 0 : index
    %c0_88 = arith.constant 0 : index
    %235 = vector.load %arg14[%c0_86, %c0_87, %c0_88] : memref<1x64x32xbf16, #tpu.memory_space<vmem>>, vector<1x64x32xbf16>
    %236 = vector.shape_cast %235 : vector<1x64x32xbf16> to vector<64x32xbf16>
    %cst_89 = arith.constant dense<0.000000e+00> : vector<16x32xf32>
    %237 = tpu.matmul %234, %236, %cst_89 {dimension_numbers = #tpu.dot_dimension_numbers<[1], [0], [0], [1], [0, 0, 1, 1], [], []>} : vector<16x64xbf16>, vector<64x32xbf16>, vector<16x32xf32> -> vector<16x32xf32>
    %c0_90 = arith.constant 0 : index
    %c0_91 = arith.constant 0 : index
    %c0_92 = arith.constant 0 : index
    %238 = vector.load %arg15[%c0_90, %c0_91, %c0_92] : memref<1x1x32xf32, #tpu.memory_space<vmem>>, vector<1x1x32xf32>
    %239 = vector.shape_cast %238 : vector<1x1x32xf32> to vector<1x32xf32>
    %240 = vector.broadcast %239 : vector<1x32xf32> to vector<16x32xf32>
    %241 = arith.addf %237, %240 : vector<16x32xf32>
    %242 = arith.addf %241, %223 : vector<16x32xf32>
    %cst_93 = arith.constant dense<0.000000e+00> : vector<16xf32>
    %243 = vector.multi_reduction <add>, %242, %cst_93 [1] : vector<16x32xf32> to vector<16xf32>
    %244 = vector.shape_cast %243 : vector<16xf32> to vector<16x1xf32>
    %cst_94 = arith.constant 3.200000e+01 : f32
    %245 = vector.broadcast %cst_94 : f32 to vector<16x1xf32>
    %246 = arith.divf %244, %245 : vector<16x1xf32>
    %247 = vector.broadcast %246 : vector<16x1xf32> to vector<16x32xf32>
    %248 = arith.subf %242, %247 : vector<16x32xf32>
    %249 = arith.mulf %248, %248 : vector<16x32xf32>
    %cst_95 = arith.constant dense<0.000000e+00> : vector<16xf32>
    %250 = vector.multi_reduction <add>, %249, %cst_95 [1] : vector<16x32xf32> to vector<16xf32>
    %251 = vector.shape_cast %250 : vector<16xf32> to vector<16x1xf32>
    %cst_96 = arith.constant 3.200000e+01 : f32
    %252 = vector.broadcast %cst_96 : f32 to vector<16x1xf32>
    %253 = arith.divf %251, %252 : vector<16x1xf32>
    %254 = vector.broadcast %246 : vector<16x1xf32> to vector<16x32xf32>
    %255 = arith.subf %242, %254 : vector<16x32xf32>
    %cst_97 = arith.constant 9.99999974E-6 : f32
    %256 = vector.broadcast %cst_97 : f32 to vector<16x1xf32>
    %257 = arith.addf %253, %256 : vector<16x1xf32>
    %258 = math.rsqrt %257 : vector<16x1xf32>
    %259 = vector.broadcast %258 : vector<16x1xf32> to vector<16x32xf32>
    %260 = arith.mulf %255, %259 : vector<16x32xf32>
    %c0_98 = arith.constant 0 : index
    %c0_99 = arith.constant 0 : index
    %c0_100 = arith.constant 0 : index
    %261 = vector.load %arg16[%c0_98, %c0_99, %c0_100] : memref<1x1x32xf32, #tpu.memory_space<vmem>>, vector<1x1x32xf32>
    %262 = vector.shape_cast %261 : vector<1x1x32xf32> to vector<1x32xf32>
    %263 = vector.broadcast %262 : vector<1x32xf32> to vector<16x32xf32>
    %264 = arith.mulf %260, %263 : vector<16x32xf32>
    %c0_101 = arith.constant 0 : index
    %c0_102 = arith.constant 0 : index
    %c0_103 = arith.constant 0 : index
    %265 = vector.load %arg17[%c0_101, %c0_102, %c0_103] : memref<1x1x32xf32, #tpu.memory_space<vmem>>, vector<1x1x32xf32>
    %266 = vector.shape_cast %265 : vector<1x1x32xf32> to vector<1x32xf32>
    %267 = vector.broadcast %266 : vector<1x32xf32> to vector<16x32xf32>
    %268 = arith.addf %264, %267 : vector<16x32xf32>
    %c0_104 = arith.constant 0 : index
    %c0_105 = arith.constant 0 : index
    %269 = vector.load %arg22[%c0_104, %c0_105] : memref<16x32xf32, #tpu.memory_space<vmem>>, vector<16x32xf32>
    tpu.vector_store %arg22[%c0_104, %c0_105], %268 {strides = array<i32>} : memref<16x32xf32, #tpu.memory_space<vmem>>, vector<16x32xf32>,
    %c1_i32 = arith.constant 1 : i32
    %270 = arith.cmpi eq, %arg1, %c1_i32 : i32
    %271 = arith.extui %270 : i1 to i32
    %c0_i32_106 = arith.constant 0 : i32
    %272 = arith.cmpi ne, %271, %c0_i32_106 : i32
    scf.if %272 {
      %c0_107 = arith.constant 0 : index
      %c0_108 = arith.constant 0 : index
      %273 = vector.load %arg22[%c0_107, %c0_108] : memref<16x32xf32, #tpu.memory_space<vmem>>, vector<16x32xf32>
      %274 = vector.shape_cast %273 : vector<16x32xf32> to vector<2x8x32xf32>
      %c0_109 = arith.constant 0 : index
      %c0_110 = arith.constant 0 : index
      %275 = vector.load %arg18[%c0_109, %c0_110] : memref<8x1xf32, #tpu.memory_space<vmem>>, vector<8x1xf32>
      %276 = vector.shape_cast %275 : vector<8x1xf32> to vector<1x8x1xf32>
      %277 = vector.broadcast %276 : vector<1x8x1xf32> to vector<2x8x32xf32>
      %278 = arith.mulf %274, %277 : vector<2x8x32xf32>
      %cst_111 = arith.constant dense<0.000000e+00> : vector<2x32xf32>
      %279 = vector.multi_reduction <add>, %278, %cst_111 [1] : vector<2x8x32xf32> to vector<2x32xf32>
      %280 = arith.truncf %279 : vector<2x32xf32> to vector<2x32xbf16>
      %c0_112 = arith.constant 0 : index
      %c0_113 = arith.constant 0 : index
      %281 = vector.load %arg19[%c0_112, %c0_113] : memref<32x128xbf16, #tpu.memory_space<vmem>>, vector<32x128xbf16>
      %cst_114 = arith.constant dense<0.000000e+00> : vector<2x128xf32>
      %282 = tpu.matmul %280, %281, %cst_114 {dimension_numbers = #tpu.dot_dimension_numbers<[1], [0], [0], [1], [0, 0, 1, 1], [], []>} : vector<2x32xbf16>, vector<32x128xbf16>, vector<2x128xf32> -> vector<2x128xf32>
      %c0_115 = arith.constant 0 : index
      %c0_116 = arith.constant 0 : index
      %283 = vector.load %arg20[%c0_115, %c0_116] : memref<1x128xf32, #tpu.memory_space<vmem>>, vector<1x128xf32>
      %284 = vector.broadcast %283 : vector<1x128xf32> to vector<2x128xf32>
      %285 = arith.addf %282, %284 : vector<2x128xf32>
      %c0_117 = arith.constant 0 : index
      %c0_118 = arith.constant 0 : index
      %286 = vector.load %arg21[%c0_117, %c0_118] : memref<2x128xf32, #tpu.memory_space<vmem>>, vector<2x128xf32>
      tpu.vector_store %arg21[%c0_117, %c0_118], %285 {strides = array<i32>} : memref<2x128xf32, #tpu.memory_space<vmem>>, vector<2x128xf32>,
    } else {
    }
    return
  }
  func.func @transform_0(%arg0: i32, %arg1: i32) -> (i32, i32, i32) {
    %c0_i32 = arith.constant 0 : i32
    %c0_i32_0 = arith.constant 0 : i32
    %c0_i32_1 = arith.constant 0 : i32
    return %arg0, %c0_i32, %c0_i32_0 : i32, i32, i32
  }
  func.func @transform_1(%arg0: i32, %arg1: i32) -> (i32, i32, i32) {
    %c0_i32 = arith.constant 0 : i32
    %c0_i32_0 = arith.constant 0 : i32
    %c0_i32_1 = arith.constant 0 : i32
    return %arg0, %c0_i32, %c0_i32_0 : i32, i32, i32
  }
  func.func @transform_2(%arg0: i32, %arg1: i32) -> (i32, i32) {
    %c0_i32 = arith.constant 0 : i32
    %c0_i32_0 = arith.constant 0 : i32
    %c0_i32_1 = arith.constant 0 : i32
    return %c0_i32, %c0_i32_0 : i32, i32
  }
  func.func @transform_3(%arg0: i32, %arg1: i32) -> (i32, i32) {
    %c0_i32 = arith.constant 0 : i32
    %c0_i32_0 = arith.constant 0 : i32
    %c0_i32_1 = arith.constant 0 : i32
    return %c0_i32, %c0_i32_0 : i32, i32
  }
  func.func @transform_4(%arg0: i32, %arg1: i32) -> (i32, i32, i32) {
    %c0_i32 = arith.constant 0 : i32
    %c0_i32_0 = arith.constant 0 : i32
    %c0_i32_1 = arith.constant 0 : i32
    return %arg1, %c0_i32, %c0_i32_0 : i32, i32, i32
  }
  func.func @transform_5(%arg0: i32, %arg1: i32) -> (i32, i32, i32) {
    %c0_i32 = arith.constant 0 : i32
    %c0_i32_0 = arith.constant 0 : i32
    %c0_i32_1 = arith.constant 0 : i32
    return %arg1, %c0_i32, %c0_i32_0 : i32, i32, i32
  }
  func.func @transform_6(%arg0: i32, %arg1: i32) -> (i32, i32, i32) {
    %c0_i32 = arith.constant 0 : i32
    %c0_i32_0 = arith.constant 0 : i32
    %c0_i32_1 = arith.constant 0 : i32
    return %arg1, %c0_i32, %c0_i32_0 : i32, i32, i32
  }
  func.func @transform_7(%arg0: i32, %arg1: i32) -> (i32, i32, i32) {
    %c0_i32 = arith.constant 0 : i32
    %c0_i32_0 = arith.constant 0 : i32
    %c0_i32_1 = arith.constant 0 : i32
    return %arg1, %c0_i32, %c0_i32_0 : i32, i32, i32
  }
  func.func @transform_8(%arg0: i32, %arg1: i32) -> (i32, i32, i32) {
    %c0_i32 = arith.constant 0 : i32
    %c0_i32_0 = arith.constant 0 : i32
    %c0_i32_1 = arith.constant 0 : i32
    return %arg1, %c0_i32, %c0_i32_0 : i32, i32, i32
  }
  func.func @transform_9(%arg0: i32, %arg1: i32) -> (i32, i32, i32) {
    %c0_i32 = arith.constant 0 : i32
    %c0_i32_0 = arith.constant 0 : i32
    %c0_i32_1 = arith.constant 0 : i32
    return %arg1, %c0_i32, %c0_i32_0 : i32, i32, i32
  }
  func.func @transform_10(%arg0: i32, %arg1: i32) -> (i32, i32, i32) {
    %c0_i32 = arith.constant 0 : i32
    %c0_i32_0 = arith.constant 0 : i32
    %c0_i32_1 = arith.constant 0 : i32
    return %arg1, %c0_i32, %c0_i32_0 : i32, i32, i32
  }
  func.func @transform_11(%arg0: i32, %arg1: i32) -> (i32, i32, i32) {
    %c0_i32 = arith.constant 0 : i32
    %c0_i32_0 = arith.constant 0 : i32
    %c0_i32_1 = arith.constant 0 : i32
    return %arg1, %c0_i32, %c0_i32_0 : i32, i32, i32
  }
  func.func @transform_12(%arg0: i32, %arg1: i32) -> (i32, i32, i32) {
    %c0_i32 = arith.constant 0 : i32
    %c0_i32_0 = arith.constant 0 : i32
    %c0_i32_1 = arith.constant 0 : i32
    return %arg1, %c0_i32, %c0_i32_0 : i32, i32, i32
  }
  func.func @transform_13(%arg0: i32, %arg1: i32) -> (i32, i32, i32) {
    %c0_i32 = arith.constant 0 : i32
    %c0_i32_0 = arith.constant 0 : i32
    %c0_i32_1 = arith.constant 0 : i32
    return %arg1, %c0_i32, %c0_i32_0 : i32, i32, i32
  }
  func.func @transform_14(%arg0: i32, %arg1: i32) -> (i32, i32, i32) {
    %c0_i32 = arith.constant 0 : i32
    %c0_i32_0 = arith.constant 0 : i32
    %c0_i32_1 = arith.constant 0 : i32
    return %arg1, %c0_i32, %c0_i32_0 : i32, i32, i32
  }
  func.func @transform_15(%arg0: i32, %arg1: i32) -> (i32, i32, i32) {
    %c0_i32 = arith.constant 0 : i32
    %c0_i32_0 = arith.constant 0 : i32
    %c0_i32_1 = arith.constant 0 : i32
    return %arg1, %c0_i32, %c0_i32_0 : i32, i32, i32
  }
  func.func @transform_16(%arg0: i32, %arg1: i32) -> (i32, i32) {
    %c0_i32 = arith.constant 0 : i32
    %c0_i32_0 = arith.constant 0 : i32
    %c0_i32_1 = arith.constant 0 : i32
    return %c0_i32, %c0_i32_0 : i32, i32
  }
  func.func @transform_17(%arg0: i32, %arg1: i32) -> (i32, i32) {
    %c0_i32 = arith.constant 0 : i32
    %c0_i32_0 = arith.constant 0 : i32
    %c0_i32_1 = arith.constant 0 : i32
    return %c0_i32, %c0_i32_0 : i32, i32
  }
  func.func @transform_18(%arg0: i32, %arg1: i32) -> (i32, i32) {
    %c0_i32 = arith.constant 0 : i32
    %c0_i32_0 = arith.constant 0 : i32
    %c0_i32_1 = arith.constant 0 : i32
    return %c0_i32, %c0_i32_0 : i32, i32
  }
  func.func @transform_19(%arg0: i32, %arg1: i32) -> (i32, i32) {
    %c0_i32 = arith.constant 0 : i32
    %c0_i32_0 = arith.constant 0 : i32
    return %arg0, %c0_i32 : i32, i32
  }
}

</mosaic_0001>

<llo_original>
// kernel: transformer_forward.1
$region0: #{transformer_forward.1}
  #allocation0 [shape = 'u32[]', space=smem, size = 0x4, offset = 0x4, fixed_abs, tag = 'smem constant byte address 0x4 - core index']
  #allocation1 [shape = 'u32[72,128]{1,0:T(1,128)}', space=vmem, size = 0x9000, scoped, tag = 'internal scratch']
  #allocation2 [shape = 'f32[16,32]{1,0:T(8,128)}', space=vmem, size = 0x2000, scoped, tag = 'scratch operand']
  #allocation3 [shape = 'f32[16,32]{1,0:T(8,128)}', space=vmem, size = 0x2000, scoped, tag = 'scratch operand']
  %s0 = inlined_call_operand.vmem [shape: bf16[2,8,16], index: 0, kind: input, shape index: {}]
  %s1 = inlined_call_operand.vmem [shape: f32[2,1,8], index: 1, kind: input, shape index: {}]
  %s2 = inlined_call_operand.vmem [shape: f32[16,32], index: 2, kind: input, shape index: {}]
  %s3 = inlined_call_operand.vmem [shape: bf16[16,32], index: 3, kind: input, shape index: {}]
  %s4 = inlined_call_operand.vmem [shape: bf16[2,32,96], index: 4, kind: input, shape index: {}]
  %s5 = inlined_call_operand.vmem [shape: f32[2,1,96], index: 5, kind: input, shape index: {}]
  %s6 = inlined_call_operand.vmem [shape: bf16[2,32,32], index: 6, kind: input, shape index: {}]
  %s7 = inlined_call_operand.vmem [shape: f32[2,1,32], index: 7, kind: input, shape index: {}]
  %s8 = inlined_call_operand.vmem [shape: f32[2,1,32], index: 8, kind: input, shape index: {}]
  %s9 = inlined_call_operand.vmem [shape: f32[2,1,32], index: 9, kind: input, shape index: {}]
  %s10 = inlined_call_operand.vmem [shape: bf16[2,32,64], index: 10, kind: input, shape index: {}]
  %s11 = inlined_call_operand.vmem [shape: f32[2,1,64], index: 11, kind: input, shape index: {}]
  %s12 = inlined_call_operand.vmem [shape: bf16[2,64,32], index: 12, kind: input, shape index: {}]
  %s13 = inlined_call_operand.vmem [shape: f32[2,1,32], index: 13, kind: input, shape index: {}]
  %s14 = inlined_call_operand.vmem [shape: f32[2,1,32], index: 14, kind: input, shape index: {}]
  %s15 = inlined_call_operand.vmem [shape: f32[2,1,32], index: 15, kind: input, shape index: {}]
  %s16 = inlined_call_operand.vmem [shape: f32[8,1], index: 16, kind: input, shape index: {}]
  %s17 = inlined_call_operand.vmem [shape: bf16[32,128], index: 17, kind: input, shape index: {}]
  %s18 = inlined_call_operand.vmem [shape: f32[1,128], index: 18, kind: input, shape index: {}]
  %s19 = inlined_call_operand.hbm [shape: f32[2,128], index: 19, kind: output, shape index: {}]
  %s20 = sld [smem:[#allocation0]]
  $region117: #{transformer_forward.1} parent=0
    _
  %s22 = ssub.s32 1, %s20
  %s23 = scalar_select 0, %s22, %s20
  $region1: #{transformer_forward.1} parent=0
    #allocation4 [shape = 'u8[1024]{0}', space=vmem, size = 0x400, scoped, tag = 'output window, operand 0, single buffered']
    #allocation5 [shape = 's32[2]{0}', space=sflag, size = 0x8, scoped, tag = 'scoped memory for transformer_forward.1']
    %24 = vsyncpa [#allocation5], 0
    loop: start=0, step=1, limit=4
    $region2: #{transformer_forward.1} parent=1 // loop_pre_header
      _
    $region3: #{transformer_forward.1} parent=1 // loop_header
      %s26 = sphi 0, %s30
      %p27 = scmp.ge.s32.totalorder %s26, 4
      %s33 = sphi 0, %s45
      %s34 = sphi 0, %s41
      %s35 = sphi 0, %s33
      %s36 = sphi 0, %s34
      %s37 = sphi 0, %s35
      %s38 = sphi 0, %s36
      %s48 = sphi 0, %s50
      %s51 = sphi 0, %s48
      %s52 = sphi 0, %s51
      %s68 = sphi 0, %s52
      %s74 = sphi 0, %s76
      %s77 = sphi 0, %s74
      %s78 = sphi 0, %s77
      %s94 = sphi 0, %s78
      %s98 = sphi 0, %s98
      %s100 = sphi 0, %s98
      %s101 = sphi 0, %s100
      %s115 = sphi 0, %s101
      %s119 = sphi 0, %s119
      %s121 = sphi 0, %s119
      %s122 = sphi 0, %s121
      %s136 = sphi 0, %s122
      %s142 = sphi 0, %s144
      %s145 = sphi 0, %s142
      %s146 = sphi 0, %s145
      %s162 = sphi 0, %s146
      %s168 = sphi 0, %s170
      %s171 = sphi 0, %s168
      %s172 = sphi 0, %s171
      %s188 = sphi 0, %s172
      %s194 = sphi 0, %s196
      %s197 = sphi 0, %s194
      %s198 = sphi 0, %s197
      %s214 = sphi 0, %s198
      %s220 = sphi 0, %s222
      %s223 = sphi 0, %s220
      %s224 = sphi 0, %s223
      %s240 = sphi 0, %s224
      %s246 = sphi 0, %s248
      %s249 = sphi 0, %s246
      %s250 = sphi 0, %s249
      %s266 = sphi 0, %s250
      %s272 = sphi 0, %s274
      %s275 = sphi 0, %s272
      %s276 = sphi 0, %s275
      %s292 = sphi 0, %s276
      %s298 = sphi 0, %s300
      %s301 = sphi 0, %s298
      %s302 = sphi 0, %s301
      %s318 = sphi 0, %s302
      %s324 = sphi 0, %s326
      %s327 = sphi 0, %s324
      %s328 = sphi 0, %s327
      %s344 = sphi 0, %s328
      %s350 = sphi 0, %s352
      %s353 = sphi 0, %s350
      %s354 = sphi 0, %s353
      %s370 = sphi 0, %s354
      %s376 = sphi 0, %s378
      %s379 = sphi 0, %s376
      %s380 = sphi 0, %s379
      %s396 = sphi 0, %s380
      %s402 = sphi 0, %s404
      %s405 = sphi 0, %s402
      %s406 = sphi 0, %s405
      %s422 = sphi 0, %s406
      %s428 = sphi 0, %s430
      %s431 = sphi 0, %s428
      %s432 = sphi 0, %s431
      %s448 = sphi 0, %s432
      %s452 = sphi 0, %s452
      %s454 = sphi 0, %s452
      %s455 = sphi 0, %s454
      %s469 = sphi 0, %s455
      %s473 = sphi 0, %s473
      %s475 = sphi 0, %s473
      %s476 = sphi 0, %s475
      %s490 = sphi 0, %s476
      %s494 = sphi 0, %s494
      %s496 = sphi 0, %s494
      %s497 = sphi 0, %s496
      %s511 = sphi 0, %s497
      %s517 = sphi 0, %s519
      %s520 = sphi 0, %s517
      %s521 = sphi 0, %s520
      %s537 = sphi 0, %s521
    $region4: #{transformer_forward.1} parent=1 // loop_header_branch
      %29 = sbr.rel (%p27) target = $region8
    $region5: #{transformer_forward.1} parent=1 // loop_body
      %s31 = ssub.s32 %s26, 1
      %s32 = ssub.s32 %s26, 2
      %s39 = sadd.s32 1, %s34
      %p40 = scmp.ge.s32.totalorder %s39, 2
      %s41 = scalar_select %p40, 0, %s39
      %s42 = sadd.s32 1, %s33
      %s43 = scalar_select %p40, %s42, %s33
      %p44 = scmp.ge.s32.totalorder %s43, 1
      %s45 = scalar_select %p44, 0, %s43
      %s46 = ssub.s32 %s33, %s45
      %p47 = scmp.eq.s32.totalorder %s46, 0
      %s49 = sadd.s32 %s48, 1
      %s50 = scalar_select %p47, %s48, %s49
      %p53 = pneg %p47
      %p54 = scmp.eq.s32.totalorder %s26, 1
      %p55 = por %p53, %p54
      %p56 = scmp.ne.s32.totalorder %s48, %s51
      %p57 = scmp.eq.s32.totalorder %s26, 0
      %p58 = por %p56, %p57
      %p59 = scmp.ne.s32.totalorder %s48, %s51
      %p60 = scmp.eq.s32.totalorder %s31, 1
      %p61 = por %p59, %p60
      %p62 = scmp.ne.s32.totalorder %s51, %s52
      %p63 = scmp.eq.s32.totalorder %s31, 0
      %p64 = por %p62, %p63
      %p65 = scmp.ne.s32.totalorder %s51, %s52
      %p66 = scmp.eq.s32.totalorder %s32, 1
      %p67 = por %p65, %p66
      %p69 = scmp.ne.s32.totalorder %s52, %s68
      %p70 = scmp.eq.s32.totalorder %s32, 0
      %p71 = por %p69, %p70
      %s72 = ssub.s32 %s33, %s45
      %p73 = scmp.eq.s32.totalorder %s72, 0
      %s75 = sadd.s32 %s74, 1
      %s76 = scalar_select %p73, %s74, %s75
      %p79 = pneg %p73
      %p80 = scmp.eq.s32.totalorder %s26, 1
      %p81 = por %p79, %p80
      %p82 = scmp.ne.s32.totalorder %s74, %s77
      %p83 = scmp.eq.s32.totalorder %s26, 0
      %p84 = por %p82, %p83
      %p85 = scmp.ne.s32.totalorder %s74, %s77
      %p86 = scmp.eq.s32.totalorder %s31, 1
      %p87 = por %p85, %p86
      %p88 = scmp.ne.s32.totalorder %s77, %s78
      %p89 = scmp.eq.s32.totalorder %s31, 0
      %p90 = por %p88, %p89
      %p91 = scmp.ne.s32.totalorder %s77, %s78
      %p92 = scmp.eq.s32.totalorder %s32, 1
      %p93 = por %p91, %p92
      %p95 = scmp.ne.s32.totalorder %s78, %s94
      %p96 = scmp.eq.s32.totalorder %s32, 0
      %p97 = por %p95, %p96
      %s99 = sadd.s32 %s98, 1
      %p102 = scmp.eq.s32.totalorder %s26, 1
      %p103 = scmp.ne.s32.totalorder %s98, %s100
      %p104 = scmp.eq.s32.totalorder %s26, 0
      %p105 = por %p103, %p104
      %p106 = scmp.ne.s32.totalorder %s98, %s100
      %p107 = scmp.eq.s32.totalorder %s31, 1
      %p108 = por %p106, %p107
      %p109 = scmp.ne.s32.totalorder %s100, %s101
      %p110 = scmp.eq.s32.totalorder %s31, 0
      %p111 = por %p109, %p110
      %p112 = scmp.ne.s32.totalorder %s100, %s101
      %p113 = scmp.eq.s32.totalorder %s32, 1
      %p114 = por %p112, %p113
      %p116 = scmp.ne.s32.totalorder %s101, %s115
      %p117 = scmp.eq.s32.totalorder %s32, 0
      %p118 = por %p116, %p117
      %s120 = sadd.s32 %s119, 1
      %p123 = scmp.eq.s32.totalorder %s26, 1
      %p124 = scmp.ne.s32.totalorder %s119, %s121
      %p125 = scmp.eq.s32.totalorder %s26, 0
      %p126 = por %p124, %p125
      %p127 = scmp.ne.s32.totalorder %s119, %s121
      %p128 = scmp.eq.s32.totalorder %s31, 1
      %p129 = por %p127, %p128
      %p130 = scmp.ne.s32.totalorder %s121, %s122
      %p131 = scmp.eq.s32.totalorder %s31, 0
      %p132 = por %p130, %p131
      %p133 = scmp.ne.s32.totalorder %s121, %s122
      %p134 = scmp.eq.s32.totalorder %s32, 1
      %p135 = por %p133, %p134
      %p137 = scmp.ne.s32.totalorder %s122, %s136
      %p138 = scmp.eq.s32.totalorder %s32, 0
      %p139 = por %p137, %p138
      %s140 = ssub.s32 %s34, %s41
      %p141 = scmp.eq.s32.totalorder %s140, 0
      %s143 = sadd.s32 %s142, 1
      %s144 = scalar_select %p141, %s142, %s143
      %p147 = pneg %p141
      %p148 = scmp.eq.s32.totalorder %s26, 1
      %p149 = por %p147, %p148
      %p150 = scmp.ne.s32.totalorder %s142, %s145
      %p151 = scmp.eq.s32.totalorder %s26, 0
      %p152 = por %p150, %p151
      %p153 = scmp.ne.s32.totalorder %s142, %s145
      %p154 = scmp.eq.s32.totalorder %s31, 1
      %p155 = por %p153, %p154
      %p156 = scmp.ne.s32.totalorder %s145, %s146
      %p157 = scmp.eq.s32.totalorder %s31, 0
      %p158 = por %p156, %p157
      %p159 = scmp.ne.s32.totalorder %s145, %s146
      %p160 = scmp.eq.s32.totalorder %s32, 1
      %p161 = por %p159, %p160
      %p163 = scmp.ne.s32.totalorder %s146, %s162
      %p164 = scmp.eq.s32.totalorder %s32, 0
      %p165 = por %p163, %p164
      %s166 = ssub.s32 %s34, %s41
      %p167 = scmp.eq.s32.totalorder %s166, 0
      %s169 = sadd.s32 %s168, 1
      %s170 = scalar_select %p167, %s168, %s169
      %p173 = pneg %p167
      %p174 = scmp.eq.s32.totalorder %s26, 1
      %p175 = por %p173, %p174
      %p176 = scmp.ne.s32.totalorder %s168, %s171
      %p177 = scmp.eq.s32.totalorder %s26, 0
      %p178 = por %p176, %p177
      %p179 = scmp.ne.s32.totalorder %s168, %s171
      %p180 = scmp.eq.s32.totalorder %s31, 1
      %p181 = por %p179, %p180
      %p182 = scmp.ne.s32.totalorder %s171, %s172
      %p183 = scmp.eq.s32.totalorder %s31, 0
      %p184 = por %p182, %p183
      %p185 = scmp.ne.s32.totalorder %s171, %s172
      %p186 = scmp.eq.s32.totalorder %s32, 1
      %p187 = por %p185, %p186
      %p189 = scmp.ne.s32.totalorder %s172, %s188
      %p190 = scmp.eq.s32.totalorder %s32, 0
      %p191 = por %p189, %p190
      %s192 = ssub.s32 %s34, %s41
      %p193 = scmp.eq.s32.totalorder %s192, 0
      %s195 = sadd.s32 %s194, 1
      %s196 = scalar_select %p193, %s194, %s195
      %p199 = pneg %p193
      %p200 = scmp.eq.s32.totalorder %s26, 1
      %p201 = por %p199, %p200
      %p202 = scmp.ne.s32.totalorder %s194, %s197
      %p203 = scmp.eq.s32.totalorder %s26, 0
      %p204 = por %p202, %p203
      %p205 = scmp.ne.s32.totalorder %s194, %s197
      %p206 = scmp.eq.s32.totalorder %s31, 1
      %p207 = por %p205, %p206
      %p208 = scmp.ne.s32.totalorder %s197, %s198
      %p209 = scmp.eq.s32.totalorder %s31, 0
      %p210 = por %p208, %p209
      %p211 = scmp.ne.s32.totalorder %s197, %s198
      %p212 = scmp.eq.s32.totalorder %s32, 1
      %p213 = por %p211, %p212
      %p215 = scmp.ne.s32.totalorder %s198, %s214
      %p216 = scmp.eq.s32.totalorder %s32, 0
      %p217 = por %p215, %p216
      %s218 = ssub.s32 %s34, %s41
      %p219 = scmp.eq.s32.totalorder %s218, 0
      %s221 = sadd.s32 %s220, 1
      %s222 = scalar_select %p219, %s220, %s221
      %p225 = pneg %p219
      %p226 = scmp.eq.s32.totalorder %s26, 1
      %p227 = por %p225, %p226
      %p228 = scmp.ne.s32.totalorder %s220, %s223
      %p229 = scmp.eq.s32.totalorder %s26, 0
      %p230 = por %p228, %p229
      %p231 = scmp.ne.s32.totalorder %s220, %s223
      %p232 = scmp.eq.s32.totalorder %s31, 1
      %p233 = por %p231, %p232
      %p234 = scmp.ne.s32.totalorder %s223, %s224
      %p235 = scmp.eq.s32.totalorder %s31, 0
      %p236 = por %p234, %p235
      %p237 = scmp.ne.s32.totalorder %s223, %s224
      %p238 = scmp.eq.s32.totalorder %s32, 1
      %p239 = por %p237, %p238
      %p241 = scmp.ne.s32.totalorder %s224, %s240
      %p242 = scmp.eq.s32.totalorder %s32, 0
      %p243 = por %p241, %p242
      %s244 = ssub.s32 %s34, %s41
      %p245 = scmp.eq.s32.totalorder %s244, 0
      %s247 = sadd.s32 %s246, 1
      %s248 = scalar_select %p245, %s246, %s247
      %p251 = pneg %p245
      %p252 = scmp.eq.s32.totalorder %s26, 1
      %p253 = por %p251, %p252
      %p254 = scmp.ne.s32.totalorder %s246, %s249
      %p255 = scmp.eq.s32.totalorder %s26, 0
      %p256 = por %p254, %p255
      %p257 = scmp.ne.s32.totalorder %s246, %s249
      %p258 = scmp.eq.s32.totalorder %s31, 1
      %p259 = por %p257, %p258
      %p260 = scmp.ne.s32.totalorder %s249, %s250
      %p261 = scmp.eq.s32.totalorder %s31, 0
      %p262 = por %p260, %p261
      %p263 = scmp.ne.s32.totalorder %s249, %s250
      %p264 = scmp.eq.s32.totalorder %s32, 1
      %p265 = por %p263, %p264
      %p267 = scmp.ne.s32.totalorder %s250, %s266
      %p268 = scmp.eq.s32.totalorder %s32, 0
      %p269 = por %p267, %p268
      %s270 = ssub.s32 %s34, %s41
      %p271 = scmp.eq.s32.totalorder %s270, 0
      %s273 = sadd.s32 %s272, 1
      %s274 = scalar_select %p271, %s272, %s273
      %p277 = pneg %p271
      %p278 = scmp.eq.s32.totalorder %s26, 1
      %p279 = por %p277, %p278
      %p280 = scmp.ne.s32.totalorder %s272, %s275
      %p281 = scmp.eq.s32.totalorder %s26, 0
      %p282 = por %p280, %p281
      %p283 = scmp.ne.s32.totalorder %s272, %s275
      %p284 = scmp.eq.s32.totalorder %s31, 1
      %p285 = por %p283, %p284
      %p286 = scmp.ne.s32.totalorder %s275, %s276
      %p287 = scmp.eq.s32.totalorder %s31, 0
      %p288 = por %p286, %p287
      %p289 = scmp.ne.s32.totalorder %s275, %s276
      %p290 = scmp.eq.s32.totalorder %s32, 1
      %p291 = por %p289, %p290
      %p293 = scmp.ne.s32.totalorder %s276, %s292
      %p294 = scmp.eq.s32.totalorder %s32, 0
      %p295 = por %p293, %p294
      %s296 = ssub.s32 %s34, %s41
      %p297 = scmp.eq.s32.totalorder %s296, 0
      %s299 = sadd.s32 %s298, 1
      %s300 = scalar_select %p297, %s298, %s299
      %p303 = pneg %p297
      %p304 = scmp.eq.s32.totalorder %s26, 1
      %p305 = por %p303, %p304
      %p306 = scmp.ne.s32.totalorder %s298, %s301
      %p307 = scmp.eq.s32.totalorder %s26, 0
      %p308 = por %p306, %p307
      %p309 = scmp.ne.s32.totalorder %s298, %s301
      %p310 = scmp.eq.s32.totalorder %s31, 1
      %p311 = por %p309, %p310
      %p312 = scmp.ne.s32.totalorder %s301, %s302
      %p313 = scmp.eq.s32.totalorder %s31, 0
      %p314 = por %p312, %p313
      %p315 = scmp.ne.s32.totalorder %s301, %s302
      %p316 = scmp.eq.s32.totalorder %s32, 1
      %p317 = por %p315, %p316
      %p319 = scmp.ne.s32.totalorder %s302, %s318
      %p320 = scmp.eq.s32.totalorder %s32, 0
      %p321 = por %p319, %p320
      %s322 = ssub.s32 %s34, %s41
      %p323 = scmp.eq.s32.totalorder %s322, 0
      %s325 = sadd.s32 %s324, 1
      %s326 = scalar_select %p323, %s324, %s325
      %p329 = pneg %p323
      %p330 = scmp.eq.s32.totalorder %s26, 1
      %p331 = por %p329, %p330
      %p332 = scmp.ne.s32.totalorder %s324, %s327
      %p333 = scmp.eq.s32.totalorder %s26, 0
      %p334 = por %p332, %p333
      %p335 = scmp.ne.s32.totalorder %s324, %s327
      %p336 = scmp.eq.s32.totalorder %s31, 1
      %p337 = por %p335, %p336
      %p338 = scmp.ne.s32.totalorder %s327, %s328
      %p339 = scmp.eq.s32.totalorder %s31, 0
      %p340 = por %p338, %p339
      %p341 = scmp.ne.s32.totalorder %s327, %s328
      %p342 = scmp.eq.s32.totalorder %s32, 1
      %p343 = por %p341, %p342
      %p345 = scmp.ne.s32.totalorder %s328, %s344
      %p346 = scmp.eq.s32.totalorder %s32, 0
      %p347 = por %p345, %p346
      %s348 = ssub.s32 %s34, %s41
      %p349 = scmp.eq.s32.totalorder %s348, 0
      %s351 = sadd.s32 %s350, 1
      %s352 = scalar_select %p349, %s350, %s351
      %p355 = pneg %p349
      %p356 = scmp.eq.s32.totalorder %s26, 1
      %p357 = por %p355, %p356
      %p358 = scmp.ne.s32.totalorder %s350, %s353
      %p359 = scmp.eq.s32.totalorder %s26, 0
      %p360 = por %p358, %p359
      %p361 = scmp.ne.s32.totalorder %s350, %s353
      %p362 = scmp.eq.s32.totalorder %s31, 1
      %p363 = por %p361, %p362
      %p364 = scmp.ne.s32.totalorder %s353, %s354
      %p365 = scmp.eq.s32.totalorder %s31, 0
      %p366 = por %p364, %p365
      %p367 = scmp.ne.s32.totalorder %s353, %s354
      %p368 = scmp.eq.s32.totalorder %s32, 1
      %p369 = por %p367, %p368
      %p371 = scmp.ne.s32.totalorder %s354, %s370
      %p372 = scmp.eq.s32.totalorder %s32, 0
      %p373 = por %p371, %p372
      %s374 = ssub.s32 %s34, %s41
      %p375 = scmp.eq.s32.totalorder %s374, 0
      %s377 = sadd.s32 %s376, 1
      %s378 = scalar_select %p375, %s376, %s377
      %p381 = pneg %p375
      %p382 = scmp.eq.s32.totalorder %s26, 1
      %p383 = por %p381, %p382
      %p384 = scmp.ne.s32.totalorder %s376, %s379
      %p385 = scmp.eq.s32.totalorder %s26, 0
      %p386 = por %p384, %p385
      %p387 = scmp.ne.s32.totalorder %s376, %s379
      %p388 = scmp.eq.s32.totalorder %s31, 1
      %p389 = por %p387, %p388
      %p390 = scmp.ne.s32.totalorder %s379, %s380
      %p391 = scmp.eq.s32.totalorder %s31, 0
      %p392 = por %p390, %p391
      %p393 = scmp.ne.s32.totalorder %s379, %s380
      %p394 = scmp.eq.s32.totalorder %s32, 1
      %p395 = por %p393, %p394
      %p397 = scmp.ne.s32.totalorder %s380, %s396
      %p398 = scmp.eq.s32.totalorder %s32, 0
      %p399 = por %p397, %p398
      %s400 = ssub.s32 %s34, %s41
      %p401 = scmp.eq.s32.totalorder %s400, 0
      %s403 = sadd.s32 %s402, 1
      %s404 = scalar_select %p401, %s402, %s403
      %p407 = pneg %p401
      %p408 = scmp.eq.s32.totalorder %s26, 1
      %p409 = por %p407, %p408
      %p410 = scmp.ne.s32.totalorder %s402, %s405
      %p411 = scmp.eq.s32.totalorder %s26, 0
      %p412 = por %p410, %p411
      %p413 = scmp.ne.s32.totalorder %s402, %s405
      %p414 = scmp.eq.s32.totalorder %s31, 1
      %p415 = por %p413, %p414
      %p416 = scmp.ne.s32.totalorder %s405, %s406
      %p417 = scmp.eq.s32.totalorder %s31, 0
      %p418 = por %p416, %p417
      %p419 = scmp.ne.s32.totalorder %s405, %s406
      %p420 = scmp.eq.s32.totalorder %s32, 1
      %p421 = por %p419, %p420
      %p423 = scmp.ne.s32.totalorder %s406, %s422
      %p424 = scmp.eq.s32.totalorder %s32, 0
      %p425 = por %p423, %p424
      %s426 = ssub.s32 %s34, %s41
      %p427 = scmp.eq.s32.totalorder %s426, 0
      %s429 = sadd.s32 %s428, 1
      %s430 = scalar_select %p427, %s428, %s429
      %p433 = pneg %p427
      %p434 = scmp.eq.s32.totalorder %s26, 1
      %p435 = por %p433, %p434
      %p436 = scmp.ne.s32.totalorder %s428, %s431
      %p437 = scmp.eq.s32.totalorder %s26, 0
      %p438 = por %p436, %p437
      %p439 = scmp.ne.s32.totalorder %s428, %s431
      %p440 = scmp.eq.s32.totalorder %s31, 1
      %p441 = por %p439, %p440
      %p442 = scmp.ne.s32.totalorder %s431, %s432
      %p443 = scmp.eq.s32.totalorder %s31, 0
      %p444 = por %p442, %p443
      %p445 = scmp.ne.s32.totalorder %s431, %s432
      %p446 = scmp.eq.s32.totalorder %s32, 1
      %p447 = por %p445, %p446
      %p449 = scmp.ne.s32.totalorder %s432, %s448
      %p450 = scmp.eq.s32.totalorder %s32, 0
      %p451 = por %p449, %p450
      %s453 = sadd.s32 %s452, 1
      %p456 = scmp.eq.s32.totalorder %s26, 1
      %p457 = scmp.ne.s32.totalorder %s452, %s454
      %p458 = scmp.eq.s32.totalorder %s26, 0
      %p459 = por %p457, %p458
      %p460 = scmp.ne.s32.totalorder %s452, %s454
      %p461 = scmp.eq.s32.totalorder %s31, 1
      %p462 = por %p460, %p461
      %p463 = scmp.ne.s32.totalorder %s454, %s455
      %p464 = scmp.eq.s32.totalorder %s31, 0
      %p465 = por %p463, %p464
      %p466 = scmp.ne.s32.totalorder %s454, %s455
      %p467 = scmp.eq.s32.totalorder %s32, 1
      %p468 = por %p466, %p467
      %p470 = scmp.ne.s32.totalorder %s455, %s469
      %p471 = scmp.eq.s32.totalorder %s32, 0
      %p472 = por %p470, %p471
      %s474 = sadd.s32 %s473, 1
      %p477 = scmp.eq.s32.totalorder %s26, 1
      %p478 = scmp.ne.s32.totalorder %s473, %s475
      %p479 = scmp.eq.s32.totalorder %s26, 0
      %p480 = por %p478, %p479
      %p481 = scmp.ne.s32.totalorder %s473, %s475
      %p482 = scmp.eq.s32.totalorder %s31, 1
      %p483 = por %p481, %p482
      %p484 = scmp.ne.s32.totalorder %s475, %s476
      %p485 = scmp.eq.s32.totalorder %s31, 0
      %p486 = por %p484, %p485
      %p487 = scmp.ne.s32.totalorder %s475, %s476
      %p488 = scmp.eq.s32.totalorder %s32, 1
      %p489 = por %p487, %p488
      %p491 = scmp.ne.s32.totalorder %s476, %s490
      %p492 = scmp.eq.s32.totalorder %s32, 0
      %p493 = por %p491, %p492
      %s495 = sadd.s32 %s494, 1
      %p498 = scmp.eq.s32.totalorder %s26, 1
      %p499 = scmp.ne.s32.totalorder %s494, %s496
      %p500 = scmp.eq.s32.totalorder %s26, 0
      %p501 = por %p499, %p500
      %p502 = scmp.ne.s32.totalorder %s494, %s496
      %p503 = scmp.eq.s32.totalorder %s31, 1
      %p504 = por %p502, %p503
      %p505 = scmp.ne.s32.totalorder %s496, %s497
      %p506 = scmp.eq.s32.totalorder %s31, 0
      %p507 = por %p505, %p506
      %p508 = scmp.ne.s32.totalorder %s496, %s497
      %p509 = scmp.eq.s32.totalorder %s32, 1
      %p510 = por %p508, %p509
      %p512 = scmp.ne.s32.totalorder %s497, %s511
      %p513 = scmp.eq.s32.totalorder %s32, 0
      %p514 = por %p512, %p513
      %s515 = ssub.s32 %s33, %s45
      %p516 = scmp.eq.s32.totalorder %s515, 0
      %s518 = sadd.s32 %s517, 1
      %s519 = scalar_select %p516, %s517, %s518
      %p522 = pneg %p516
      %p523 = scmp.eq.s32.totalorder %s26, 1
      %p524 = por %p522, %p523
      %p525 = scmp.ne.s32.totalorder %s517, %s520
      %p526 = scmp.eq.s32.totalorder %s26, 0
      %p527 = por %p525, %p526
      %p528 = scmp.ne.s32.totalorder %s517, %s520
      %p529 = scmp.eq.s32.totalorder %s31, 1
      %p530 = por %p528, %p529
      %p531 = scmp.ne.s32.totalorder %s520, %s521
      %p532 = scmp.eq.s32.totalorder %s31, 0
      %p533 = por %p531, %p532
      %p534 = scmp.ne.s32.totalorder %s520, %s521
      %p535 = scmp.eq.s32.totalorder %s32, 1
      %p536 = por %p534, %p535
      %p538 = scmp.ne.s32.totalorder %s521, %s537
      %p539 = scmp.eq.s32.totalorder %s32, 0
      %p540 = por %p538, %p539
      %p541 = scmp.le.s32.totalorder 1, %s26
      %p542 = scmp.lt.s32.totalorder %s26, 3
      %p543 = pnand %p541, %p542
      %p544 = pneg %p543
      // Predicated region
      $region9: #{transformer_forward.1} parent=5 // pred_check
        _
      $region10: #{transformer_forward.1} parent=5 // pred_check_branch
        %546 = sbr.rel (%p543) target = $region12
      $region11: #{transformer_forward.1} parent=5 // pred_region
        %s547 = ssub.s32 %s26, 1
        // Predicated region
        $region13: #{transformer_forward.1} parent=11 // pred_check
          %p548 = pneg %p64
        $region14: #{transformer_forward.1} parent=11 // pred_check_branch
          %550 = sbr.rel (%p548) target = $region16
        $region15: #{transformer_forward.1} parent=11 // pred_region
          %s551 = smul.u32 2, %s35
          %p552 = scmp.lt.s32.totalorder %s551, 1
          %s553 = scalar_select %p552, %s551, 1
          %s554 = smul.addr %s553, 4
          %s555 = scalar_lea.vmem %s0, %s554
          %s556 = smul.u32 2, %s35
        $region16: #{transformer_forward.1} parent=11 // pred_fallthru
          _
        // Predicated region
        $region17: #{transformer_forward.1} parent=11 // pred_check
          %p557 = pneg %p90
        $region18: #{transformer_forward.1} parent=11 // pred_check_branch
          %559 = sbr.rel (%p557) target = $region20
        $region19: #{transformer_forward.1} parent=11 // pred_region
          %s560 = smul.u32 2, %s35
          %p561 = scmp.lt.s32.totalorder %s560, 1
          %s562 = scalar_select %p561, %s560, 1
          %s563 = scalar_lea.vmem %s1, %s562
          %s564 = smul.u32 2, %s35
        $region20: #{transformer_forward.1} parent=11 // pred_fallthru
          _
        // Predicated region
        $region21: #{transformer_forward.1} parent=11 // pred_check
          %p565 = pneg %p111
        $region22: #{transformer_forward.1} parent=11 // pred_check_branch
          %567 = sbr.rel (%p565) target = $region24
        $region23: #{transformer_forward.1} parent=11 // pred_region
          _
        $region24: #{transformer_forward.1} parent=11 // pred_fallthru
          _
        // Predicated region
        $region25: #{transformer_forward.1} parent=11 // pred_check
          %p568 = pneg %p132
        $region26: #{transformer_forward.1} parent=11 // pred_check_branch
          %570 = sbr.rel (%p568) target = $region28
        $region27: #{transformer_forward.1} parent=11 // pred_region
          _
        $region28: #{transformer_forward.1} parent=11 // pred_fallthru
          _
        // Predicated region
        $region29: #{transformer_forward.1} parent=11 // pred_check
          %p571 = pneg %p465
        $region30: #{transformer_forward.1} parent=11 // pred_check_branch
          %573 = sbr.rel (%p571) target = $region32
        $region31: #{transformer_forward.1} parent=11 // pred_region
          _
        $region32: #{transformer_forward.1} parent=11 // pred_fallthru
          _
        // Predicated region
        $region33: #{transformer_forward.1} parent=11 // pred_check
          %p574 = pneg %p486
        $region34: #{transformer_forward.1} parent=11 // pred_check_branch
          %576 = sbr.rel (%p574) target = $region36
        $region35: #{transformer_forward.1} parent=11 // pred_region
          _
        $region36: #{transformer_forward.1} parent=11 // pred_fallthru
          _
        // Predicated region
        $region37: #{transformer_forward.1} parent=11 // pred_check
          %p577 = pneg %p507
        $region38: #{transformer_forward.1} parent=11 // pred_check_branch
          %579 = sbr.rel (%p577) target = $region40
        $region39: #{transformer_forward.1} parent=11 // pred_region
          _
        $region40: #{transformer_forward.1} parent=11 // pred_fallthru
          _
      $region12: #{transformer_forward.1} parent=5 // pred_fallthru
        _
      %p580 = scmp.lt.s32.totalorder %s26, 2
      // Predicated region
      $region41: #{transformer_forward.1} parent=5 // pred_check
        %p581 = pneg %p580
      $region42: #{transformer_forward.1} parent=5 // pred_check_branch
        %583 = sbr.rel (%p581) target = $region44
      $region43: #{transformer_forward.1} parent=5 // pred_region
        // Predicated region
        $region45: #{transformer_forward.1} parent=43 // pred_check
          %p584 = pneg %p152
        $region46: #{transformer_forward.1} parent=43 // pred_check_branch
          %586 = sbr.rel (%p584) target = $region48
        $region47: #{transformer_forward.1} parent=43 // pred_region
          %p587 = scmp.lt.s32.totalorder %s34, 1
          %s588 = scalar_select %p587, %s34, 1
          %s589 = smul.addr %s588, 4
          %s590 = smul.addr %s589, 4
          %s591 = scalar_lea.vmem %s4, %s590
        $region48: #{transformer_forward.1} parent=43 // pred_fallthru
          _
        // Predicated region
        $region49: #{transformer_forward.1} parent=43 // pred_check
          %p592 = pneg %p178
        $region50: #{transformer_forward.1} parent=43 // pred_check_branch
          %594 = sbr.rel (%p592) target = $region52
        $region51: #{transformer_forward.1} parent=43 // pred_region
          %p595 = scmp.lt.s32.totalorder %s34, 1
          %s596 = scalar_select %p595, %s34, 1
          %s597 = scalar_lea.vmem %s5, %s596
        $region52: #{transformer_forward.1} parent=43 // pred_fallthru
          _
        // Predicated region
        $region53: #{transformer_forward.1} parent=43 // pred_check
          %p598 = pneg %p204
        $region54: #{transformer_forward.1} parent=43 // pred_check_branch
          %600 = sbr.rel (%p598) target = $region56
        $region55: #{transformer_forward.1} parent=43 // pred_region
          %p601 = scmp.lt.s32.totalorder %s34, 1
          %s602 = scalar_select %p601, %s34, 1
          %s603 = smul.addr %s602, 4
          %s604 = smul.addr %s603, 4
          %s605 = scalar_lea.vmem %s6, %s604
        $region56: #{transformer_forward.1} parent=43 // pred_fallthru
          _
        // Predicated region
        $region57: #{transformer_forward.1} parent=43 // pred_check
          %p606 = pneg %p230
        $region58: #{transformer_forward.1} parent=43 // pred_check_branch
          %608 = sbr.rel (%p606) target = $region60
        $region59: #{transformer_forward.1} parent=43 // pred_region
          %p609 = scmp.lt.s32.totalorder %s34, 1
          %s610 = scalar_select %p609, %s34, 1
          %s611 = scalar_lea.vmem %s7, %s610
        $region60: #{transformer_forward.1} parent=43 // pred_fallthru
          _
        // Predicated region
        $region61: #{transformer_forward.1} parent=43 // pred_check
          %p612 = pneg %p256
        $region62: #{transformer_forward.1} parent=43 // pred_check_branch
          %614 = sbr.rel (%p612) target = $region64
        $region63: #{transformer_forward.1} parent=43 // pred_region
          %p615 = scmp.lt.s32.totalorder %s34, 1
          %s616 = scalar_select %p615, %s34, 1
          %s617 = scalar_lea.vmem %s8, %s616
        $region64: #{transformer_forward.1} parent=43 // pred_fallthru
          _
        // Predicated region
        $region65: #{transformer_forward.1} parent=43 // pred_check
          %p618 = pneg %p282
        $region66: #{transformer_forward.1} parent=43 // pred_check_branch
          %620 = sbr.rel (%p618) target = $region68
        $region67: #{transformer_forward.1} parent=43 // pred_region
          %p621 = scmp.lt.s32.totalorder %s34, 1
          %s622 = scalar_select %p621, %s34, 1
          %s623 = scalar_lea.vmem %s9, %s622
        $region68: #{transformer_forward.1} parent=43 // pred_fallthru
          _
        // Predicated region
        $region69: #{transformer_forward.1} parent=43 // pred_check
          %p624 = pneg %p308
        $region70: #{transformer_forward.1} parent=43 // pred_check_branch
          %626 = sbr.rel (%p624) target = $region72
        $region71: #{transformer_forward.1} parent=43 // pred_region
          %p627 = scmp.lt.s32.totalorder %s34, 1
          %s628 = scalar_select %p627, %s34, 1
          %s629 = smul.addr %s628, 4
          %s630 = smul.addr %s629, 4
          %s631 = scalar_lea.vmem %s10, %s630
        $region72: #{transformer_forward.1} parent=43 // pred_fallthru
          _
        // Predicated region
        $region73: #{transformer_forward.1} parent=43 // pred_check
          %p632 = pneg %p334
        $region74: #{transformer_forward.1} parent=43 // pred_check_branch
          %634 = sbr.rel (%p632) target = $region76
        $region75: #{transformer_forward.1} parent=43 // pred_region
          %p635 = scmp.lt.s32.totalorder %s34, 1
          %s636 = scalar_select %p635, %s34, 1
          %s637 = scalar_lea.vmem %s11, %s636
        $region76: #{transformer_forward.1} parent=43 // pred_fallthru
          _
        // Predicated region
        $region77: #{transformer_forward.1} parent=43 // pred_check
          %p638 = pneg %p360
        $region78: #{transformer_forward.1} parent=43 // pred_check_branch
          %640 = sbr.rel (%p638) target = $region80
        $region79: #{transformer_forward.1} parent=43 // pred_region
          %p641 = scmp.lt.s32.totalorder %s34, 1
          %s642 = scalar_select %p641, %s34, 1
          %s643 = smul.addr %s642, 8
          %s644 = smul.addr %s643, 4
          %s645 = scalar_lea.vmem %s12, %s644
        $region80: #{transformer_forward.1} parent=43 // pred_fallthru
          _
        // Predicated region
        $region81: #{transformer_forward.1} parent=43 // pred_check
          %p646 = pneg %p386
        $region82: #{transformer_forward.1} parent=43 // pred_check_branch
          %648 = sbr.rel (%p646) target = $region84
        $region83: #{transformer_forward.1} parent=43 // pred_region
          %p649 = scmp.lt.s32.totalorder %s34, 1
          %s650 = scalar_select %p649, %s34, 1
          %s651 = scalar_lea.vmem %s13, %s650
        $region84: #{transformer_forward.1} parent=43 // pred_fallthru
          _
        // Predicated region
        $region85: #{transformer_forward.1} parent=43 // pred_check
          %p652 = pneg %p412
        $region86: #{transformer_forward.1} parent=43 // pred_check_branch
          %654 = sbr.rel (%p652) target = $region88
        $region87: #{transformer_forward.1} parent=43 // pred_region
          %p655 = scmp.lt.s32.totalorder %s34, 1
          %s656 = scalar_select %p655, %s34, 1
          %s657 = scalar_lea.vmem %s14, %s656
        $region88: #{transformer_forward.1} parent=43 // pred_fallthru
          _
        // Predicated region
        $region89: #{transformer_forward.1} parent=43 // pred_check
          %p658 = pneg %p438
        $region90: #{transformer_forward.1} parent=43 // pred_check_branch
          %660 = sbr.rel (%p658) target = $region92
        $region91: #{transformer_forward.1} parent=43 // pred_region
          %p661 = scmp.lt.s32.totalorder %s34, 1
          %s662 = scalar_select %p661, %s34, 1
          %s663 = scalar_lea.vmem %s15, %s662
        $region92: #{transformer_forward.1} parent=43 // pred_fallthru
          _
      $region44: #{transformer_forward.1} parent=5 // pred_fallthru
        _
      %p664 = scmp.le.s32.totalorder 1, %s26
      %p665 = scmp.lt.s32.totalorder %s26, 3
      %p666 = pnand %p664, %p665
      %p667 = pneg %p666
      // Predicated region
      $region93: #{transformer_forward.1} parent=5 // pred_check
        _
      $region94: #{transformer_forward.1} parent=5 // pred_check_branch
        %669 = sbr.rel (%p666) target = $region96
      $region95: #{transformer_forward.1} parent=5 // pred_region
        %s670 = ssub.s32 %s26, 1
        %s671 = smul.u32 2, %s35
        %p672 = scmp.lt.s32.totalorder %s671, 1
        %s673 = scalar_select %p672, %s671, 1
        %s674 = smul.addr %s673, 4
        %s675 = scalar_lea.vmem %s0, %s674
        %p676 = pneg %p64
        %p677 = pneg %p61
        %s678 = smul.u32 2, %s35
        %p679 = scmp.lt.s32.totalorder %s678, 1
        %s680 = scalar_select %p679, %s678, 1
        %s681 = scalar_lea.vmem %s1, %s680
        %p682 = pneg %p90
        %p683 = pneg %p87
        %p684 = pneg %p111
        %p685 = pneg %p108
        %p686 = pneg %p132
        %p687 = pneg %p129
        %p688 = scmp.lt.s32.totalorder %s36, 1
        %s689 = scalar_select %p688, %s36, 1
        %s690 = smul.addr %s689, 4
        %s691 = smul.addr %s690, 4
        %s692 = scalar_lea.vmem %s4, %s691
        %p693 = pneg %p158
        %p694 = pneg %p155
        %p695 = scmp.lt.s32.totalorder %s36, 1
        %s696 = scalar_select %p695, %s36, 1
        %s697 = scalar_lea.vmem %s5, %s696
        %p698 = pneg %p184
        %p699 = pneg %p181
        %p700 = scmp.lt.s32.totalorder %s36, 1
        %s701 = scalar_select %p700, %s36, 1
        %s702 = smul.addr %s701, 4
        %s703 = smul.addr %s702, 4
        %s704 = scalar_lea.vmem %s6, %s703
        %p705 = pneg %p210
        %p706 = pneg %p207
        %p707 = scmp.lt.s32.totalorder %s36, 1
        %s708 = scalar_select %p707, %s36, 1
        %s709 = scalar_lea.vmem %s7, %s708
        %p710 = pneg %p236
        %p711 = pneg %p233
        %p712 = scmp.lt.s32.totalorder %s36, 1
        %s713 = scalar_select %p712, %s36, 1
        %s714 = scalar_lea.vmem %s8, %s713
        %p715 = pneg %p262
        %p716 = pneg %p259
        %p717 = scmp.lt.s32.totalorder %s36, 1
        %s718 = scalar_select %p717, %s36, 1
        %s719 = scalar_lea.vmem %s9, %s718
        %p720 = pneg %p288
        %p721 = pneg %p285
        %p722 = scmp.lt.s32.totalorder %s36, 1
        %s723 = scalar_select %p722, %s36, 1
        %s724 = smul.addr %s723, 4
        %s725 = smul.addr %s724, 4
        %s726 = scalar_lea.vmem %s10, %s725
        %p727 = pneg %p314
        %p728 = pneg %p311
        %p729 = scmp.lt.s32.totalorder %s36, 1
        %s730 = scalar_select %p729, %s36, 1
        %s731 = scalar_lea.vmem %s11, %s730
        %p732 = pneg %p340
        %p733 = pneg %p337
        %p734 = scmp.lt.s32.totalorder %s36, 1
        %s735 = scalar_select %p734, %s36, 1
        %s736 = smul.addr %s735, 8
        %s737 = smul.addr %s736, 4
        %s738 = scalar_lea.vmem %s12, %s737
        %p739 = pneg %p366
        %p740 = pneg %p363
        %p741 = scmp.lt.s32.totalorder %s36, 1
        %s742 = scalar_select %p741, %s36, 1
        %s743 = scalar_lea.vmem %s13, %s742
        %p744 = pneg %p392
        %p745 = pneg %p389
        %p746 = scmp.lt.s32.totalorder %s36, 1
        %s747 = scalar_select %p746, %s36, 1
        %s748 = scalar_lea.vmem %s14, %s747
        %p749 = pneg %p418
        %p750 = pneg %p415
        %p751 = scmp.lt.s32.totalorder %s36, 1
        %s752 = scalar_select %p751, %s36, 1
        %s753 = scalar_lea.vmem %s15, %s752
        %p754 = pneg %p444
        %p755 = pneg %p441
        %p756 = pneg %p465
        %p757 = pneg %p462
        %p758 = pneg %p486
        %p759 = pneg %p483
        %p760 = pneg %p507
        %p761 = pneg %p504
        %p762 = pneg %p533
        %p763 = pneg %p530
        %s764 = smul.u32 2, %s35
        %p765 = scmp.lt.s32.totalorder %s764, 1
        %s766 = scalar_select %p765, %s764, 1
        %s767 = smul.addr %s766, 4
        %s768 = scalar_lea.vmem %s0, %s767
        %s769 = smul.u32 2, %s35
        %s770 = smul.u32 2, %s35
        %p771 = scmp.lt.s32.totalorder %s770, 1
        %s772 = scalar_select %p771, %s770, 1
        %s773 = scalar_lea.vmem %s1, %s772
        %s774 = smul.u32 2, %s35
        %p775 = scmp.lt.s32.totalorder %s36, 1
        %s776 = scalar_select %p775, %s36, 1
        %s777 = smul.addr %s776, 4
        %s778 = smul.addr %s777, 4
        %s779 = scalar_lea.vmem %s4, %s778
        %p780 = scmp.lt.s32.totalorder %s36, 1
        %s781 = scalar_select %p780, %s36, 1
        %s782 = scalar_lea.vmem %s5, %s781
        %p783 = scmp.lt.s32.totalorder %s36, 1
        %s784 = scalar_select %p783, %s36, 1
        %s785 = smul.addr %s784, 4
        %s786 = smul.addr %s785, 4
        %s787 = scalar_lea.vmem %s6, %s786
        %p788 = scmp.lt.s32.totalorder %s36, 1
        %s789 = scalar_select %p788, %s36, 1
        %s790 = scalar_lea.vmem %s7, %s789
        %p791 = scmp.lt.s32.totalorder %s36, 1
        %s792 = scalar_select %p791, %s36, 1
        %s793 = scalar_lea.vmem %s8, %s792
        %p794 = scmp.lt.s32.totalorder %s36, 1
        %s795 = scalar_select %p794, %s36, 1
        %s796 = scalar_lea.vmem %s9, %s795
        %p797 = scmp.lt.s32.totalorder %s36, 1
        %s798 = scalar_select %p797, %s36, 1
        %s799 = smul.addr %s798, 4
        %s800 = smul.addr %s799, 4
        %s801 = scalar_lea.vmem %s10, %s800
        %p802 = scmp.lt.s32.totalorder %s36, 1
        %s803 = scalar_select %p802, %s36, 1
        %s804 = scalar_lea.vmem %s11, %s803
        %p805 = scmp.lt.s32.totalorder %s36, 1
        %s806 = scalar_select %p805, %s36, 1
        %s807 = smul.addr %s806, 8
        %s808 = smul.addr %s807, 4
        %s809 = scalar_lea.vmem %s12, %s808
        %p810 = scmp.lt.s32.totalorder %s36, 1
        %s811 = scalar_select %p810, %s36, 1
        %s812 = scalar_lea.vmem %s13, %s811
        %p813 = scmp.lt.s32.totalorder %s36, 1
        %s814 = scalar_select %p813, %s36, 1
        %s815 = scalar_lea.vmem %s14, %s814
        %p816 = scmp.lt.s32.totalorder %s36, 1
        %s817 = scalar_select %p816, %s36, 1
        %s818 = scalar_lea.vmem %s15, %s817
        %p820 = scmp.eq.s32.totalorder %s36, 0
        // Predicated region
        $region97: #{transformer_forward.1} parent=95 // pred_check
          %p821 = pneg %p820
        $region98: #{transformer_forward.1} parent=95 // pred_check_branch
          %823 = sbr.rel (%p821) target = $region100
        $region99: #{transformer_forward.1} parent=95 // pred_region
          %v824 = vld [vmem:[%s768] sm:$0xf]
          %v825 = vld [vmem:[%s768 + $0x4] sm:$0xf]
          %v826 = vld [vmem:[%s3] sm:$0xf]
          %v827 = vld [vmem:[%s3 + $0x4] sm:$0xf]
          %v828 = vld [vmem:[%s2] sm:$0xff]
          %v829 = vld [vmem:[%s2 + $0x8] sm:$0xff]
          %v832 = vunpack.c.l.b16 %v824
          %v833 = vunpack.c.l.b16 %v825
          %v834 = vpack.c.b16 %v833, %v832
          %v837 = vunpack.c.l.b16 %v826
          %v838 = vunpack.c.l.b16 %v827
          %v839 = vpack.c.b16 %v838, %v837
          %vm841 = vcmask 130048
          %v843 = vsel %vm841, %v834, 0
          %845 = vmatpush.bf16.msra.mxu0 0
          %846 = vmatpush.bf16.msra.mxu0 0
          %847 = vmatpush.bf16.msra.mxu0 0
          %848 = vmatpush.bf16.msra.mxu0 0
          %849 = vmatpush.bf16.msra.mxu0 0
          %850 = vmatpush.bf16.msra.mxu0 0
          %851 = vmatpush.bf16.msra.mxu0 0
          %852 = vmatpush.bf16.msra.mxu0 %v839
          %853 = vmatmul.bf16.gmra.mxu0 %v843
          %v854 = vpop.f32.mrf.mxu0
          %v855 = vadd.f32 %v828, %v854
          %v856 = vpop.f32.mrf.mxu0
          %v857 = vadd.f32 %v829, %v856
          %858 = vdwg.mxu0
          %vm859 = vcmask 261120
          %860 = vst.msk [vmem:[#allocation2] sm:$0xff] %vm859, %v855
          %861 = vst.msk [vmem:[#allocation2 + $0x8] sm:$0xff] %vm859, %v857
        $region100: #{transformer_forward.1} parent=95 // pred_fallthru
          _
        %v862 = vld [vmem:[#allocation2] sm:$0xff]
        %v863 = vld [vmem:[#allocation2 + $0x8] sm:$0xff]
        %v864 = vpack.c.bf16 %v863, %v862
        %v865 = vld [vmem:[%s779] sm:$0xf]
        %v866 = vld [vmem:[%s779 + $0x4] sm:$0xf]
        %v867 = vld [vmem:[%s779 + $0x8] sm:$0xf]
        %v868 = vld [vmem:[%s779 + $0xc] sm:$0xf]
        %v869 = vld [vmem:[%s782] sm:$0x1]
        %v871 = vperm.slane %v869, 0
        %v877 = vunpack.c.l.b16 %v865
        %v878 = vunpack.c.l.b16 %v866
        %v879 = vunpack.c.l.b16 %v867
        %v880 = vunpack.c.l.b16 %v868
        %v881 = vpack.c.b16 %v878, %v877
        %v882 = vpack.c.b16 %v880, %v879
        %vm885 = vcmask 261120
        %v887 = vsel %vm885, %v864, 0
        %889 = vmatpush.bf16.msra.mxu0 0
        %890 = vmatpush.bf16.msra.mxu0 0
        %891 = vmatpush.bf16.msra.mxu0 0
        %892 = vmatpush.bf16.msra.mxu0 0
        %893 = vmatpush.bf16.msra.mxu0 0
        %894 = vmatpush.bf16.msra.mxu0 0
        %895 = vmatpush.bf16.msra.mxu0 %v882
        %896 = vmatpush.bf16.msra.mxu0 %v881
        %897 = vmatmul.bf16.gmra.mxu0 %v887
        %v898 = vpop.f32.mrf.mxu0
        %v899 = vadd.f32 %v871, %v898
        %v900 = vpop.f32.mrf.mxu0
        %v901 = vadd.f32 %v871, %v900
        %902 = vdwg.mxu0
        %v903 = vld [vmem:[%s773] sm:$0x1]
        %v905 = vperm.slane %v903, 0
        %v907 = vpack.c.bf16 %v899, %v899
        %909 = vrot.lane.b32.xlu0 %v907, 96
        %v910 = vpop.permute.xlu0 %909
        %vm911 = vcmask 64512
        %v913 = vsel %vm911, %v907, 0
        %v916 = vsel %vm911, %v910, 0
        %918 = vmatpush.bf16.xpose.msra.mxu0 0
        %919 = vmatpush.bf16.xpose.msra.mxu0 0
        %920 = vmatpush.bf16.xpose.msra.mxu0 0
        %921 = vmatpush.bf16.xpose.msra.mxu0 0
        %922 = vmatpush.bf16.xpose.msra.mxu0 0
        %923 = vmatpush.bf16.xpose.msra.mxu0 0
        %924 = vmatpush.bf16.xpose.msra.mxu0 0
        %925 = vmatpush.bf16.xpose.msra.mxu0 %v916
        %926 = vmatmul.bf16.gmra.mxu0 %v913
        %v927 = vpop.f32.mrf.mxu0
        %v928 = vadd.f32 %v905, %v927
        %v929 = vpop.f32.mrf.mxu0
        %930 = vdwg.mxu0
        %v931 = vsel %vm911, %v928, -inf
        %932 = vmax.xlane.f32.xlu0 %v931
        %v933 = vpop.xlane.xlu0 %932
        %v934 = vsub.f32 %v928, %v933
        %v935 = vmul.f32 %v934, 1.442695
        %v936 = vpow.pop %v935
        %v937 = vsel %vm911, %v936, 0.0
        %938 = vadd.xlane.f32.xlu0 %v937
        %v939 = vpop.xlane.xlu0 %938
        %v940 = vrcp.pop %v939
        %v941 = vmul.f32 %v936, %v940
        %v942 = vpack.c.bf16 %v941, %v941
        %943 = vrot.lane.b32.xlu0 %v907, 64
        %v944 = vpop.permute.xlu0 %943
        %v946 = vsel %vm911, %v942, 0
        %vm948 = vcmask 1043456
        %v950 = vsel %vm948, %v944, 0
        %952 = vmatpush.bf16.msra.mxu0 0
        %953 = vmatpush.bf16.msra.mxu0 0
        %954 = vmatpush.bf16.msra.mxu0 0
        %955 = vmatpush.bf16.msra.mxu0 0
        %956 = vmatpush.bf16.msra.mxu0 0
        %957 = vmatpush.bf16.msra.mxu0 0
        %958 = vmatpush.bf16.msra.mxu0 0
        %959 = vmatpush.bf16.msra.mxu0 %v950
        %960 = vmatmul.bf16.gmra.mxu0 %v946
        %v961 = vpop.f32.mrf.mxu0
        %v962 = vadd.f32 0.0, %v961
        %v963 = vpop.f32.mrf.mxu0
        %964 = vdwg.mxu0
        %965 = vst.msk [vmem:[#allocation3] sm:$0xff] %vm911, %v962
        %966 = vrot.lane.b32.xlu0 %v907, 120
        %v967 = vpop.permute.xlu0 %966
        %968 = vrot.lane.b32.xlu0 %v907, 88
        %v969 = vpop.permute.xlu0 %968
        %v971 = vsel %vm911, %v967, 0
        %v974 = vsel %vm911, %v969, 0
        %976 = vmatpush.bf16.xpose.msra.mxu0 0
        %977 = vmatpush.bf16.xpose.msra.mxu0 0
        %978 = vmatpush.bf16.xpose.msra.mxu0 0
        %979 = vmatpush.bf16.xpose.msra.mxu0 0
        %980 = vmatpush.bf16.xpose.msra.mxu0 0
        %981 = vmatpush.bf16.xpose.msra.mxu0 0
        %982 = vmatpush.bf16.xpose.msra.mxu0 0
        %983 = vmatpush.bf16.xpose.msra.mxu0 %v974
        %984 = vmatmul.bf16.gmra.mxu0 %v971
        %v985 = vpop.f32.mrf.mxu0
        %v986 = vadd.f32 %v905, %v985
        %v987 = vpop.f32.mrf.mxu0
        %988 = vdwg.mxu0
        %v989 = vsel %vm911, %v986, -inf
        %990 = vmax.xlane.f32.xlu0 %v989
        %v991 = vpop.xlane.xlu0 %990
        %v992 = vsub.f32 %v986, %v991
        %v993 = vmul.f32 %v992, 1.442695
        %v994 = vpow.pop %v993
        %v995 = vsel %vm911, %v994, 0.0
        %996 = vadd.xlane.f32.xlu0 %v995
        %v997 = vpop.xlane.xlu0 %996
        %v998 = vrcp.pop %v997
        %v999 = vmul.f32 %v994, %v998
        %v1000 = vpack.c.bf16 %v999, %v999
        %1001 = vrot.lane.b32.xlu0 %v907, 56
        %v1002 = vpop.permute.xlu0 %1001
        %v1004 = vsel %vm911, %v1000, 0
        %v1007 = vsel %vm948, %v1002, 0
        %1009 = vmatpush.bf16.msra.mxu0 0
        %1010 = vmatpush.bf16.msra.mxu0 0
        %1011 = vmatpush.bf16.msra.mxu0 0
        %1012 = vmatpush.bf16.msra.mxu0 0
        %1013 = vmatpush.bf16.msra.mxu0 0
        %1014 = vmatpush.bf16.msra.mxu0 0
        %1015 = vmatpush.bf16.msra.mxu0 0
        %1016 = vmatpush.bf16.msra.mxu0 %v1007
        %1017 = vmatmul.bf16.gmra.mxu0 %v1004
        %v1018 = vpop.f32.mrf.mxu0
        %v1019 = vadd.f32 0.0, %v1018
        %v1020 = vpop.f32.mrf.mxu0
        %1021 = vdwg.mxu0
        %1023 = vrot.lane.b32.xlu0 %v1019, 8
        %v1024 = vpop.permute.xlu0 %1023
        %vm1026 = vcmask 130112
        %1027 = vst.msk [vmem:[#allocation3] sm:$0xff] %vm1026, %v1024
        %1028 = vrot.lane.b32.xlu0 %v907, 112
        %v1029 = vpop.permute.xlu0 %1028
        %1030 = vrot.lane.b32.xlu0 %v907, 80
        %v1031 = vpop.permute.xlu0 %1030
        %v1033 = vsel %vm911, %v1029, 0
        %v1036 = vsel %vm911, %v1031, 0
        %1038 = vmatpush.bf16.xpose.msra.mxu0 0
        %1039 = vmatpush.bf16.xpose.msra.mxu0 0
        %1040 = vmatpush.bf16.xpose.msra.mxu0 0
        %1041 = vmatpush.bf16.xpose.msra.mxu0 0
        %1042 = vmatpush.bf16.xpose.msra.mxu0 0
        %1043 = vmatpush.bf16.xpose.msra.mxu0 0
        %1044 = vmatpush.bf16.xpose.msra.mxu0 0
        %1045 = vmatpush.bf16.xpose.msra.mxu0 %v1036
        %1046 = vmatmul.bf16.gmra.mxu0 %v1033
        %v1047 = vpop.f32.mrf.mxu0
        %v1048 = vadd.f32 %v905, %v1047
        %v1049 = vpop.f32.mrf.mxu0
        %1050 = vdwg.mxu0
        %v1051 = vsel %vm911, %v1048, -inf
        %1052 = vmax.xlane.f32.xlu0 %v1051
        %v1053 = vpop.xlane.xlu0 %1052
        %v1054 = vsub.f32 %v1048, %v1053
        %v1055 = vmul.f32 %v1054, 1.442695
        %v1056 = vpow.pop %v1055
        %v1057 = vsel %vm911, %v1056, 0.0
        %1058 = vadd.xlane.f32.xlu0 %v1057
        %v1059 = vpop.xlane.xlu0 %1058
        %v1060 = vrcp.pop %v1059
        %v1061 = vmul.f32 %v1056, %v1060
        %v1062 = vpack.c.bf16 %v1061, %v1061
        %1063 = vrot.lane.b32.xlu0 %v907, 48
        %v1064 = vpop.permute.xlu0 %1063
        %v1066 = vsel %vm911, %v1062, 0
        %v1069 = vsel %vm948, %v1064, 0
        %1071 = vmatpush.bf16.msra.mxu0 0
        %1072 = vmatpush.bf16.msra.mxu0 0
        %1073 = vmatpush.bf16.msra.mxu0 0
        %1074 = vmatpush.bf16.msra.mxu0 0
        %1075 = vmatpush.bf16.msra.mxu0 0
        %1076 = vmatpush.bf16.msra.mxu0 0
        %1077 = vmatpush.bf16.msra.mxu0 0
        %1078 = vmatpush.bf16.msra.mxu0 %v1069
        %1079 = vmatmul.bf16.gmra.mxu0 %v1066
        %v1080 = vpop.f32.mrf.mxu0
        %v1081 = vadd.f32 0.0, %v1080
        %v1082 = vpop.f32.mrf.mxu0
        %1083 = vdwg.mxu0
        %1085 = vrot.lane.b32.xlu0 %v1081, 16
        %v1086 = vpop.permute.xlu0 %1085
        %vm1088 = vcmask 195712
        %1089 = vst.msk [vmem:[#allocation3] sm:$0xff] %vm1088, %v1086
        %1090 = vrot.lane.b32.xlu0 %v907, 104
        %v1091 = vpop.permute.xlu0 %1090
        %1092 = vrot.lane.b32.xlu0 %v907, 72
        %v1093 = vpop.permute.xlu0 %1092
        %v1095 = vsel %vm911, %v1091, 0
        %v1098 = vsel %vm911, %v1093, 0
        %1100 = vmatpush.bf16.xpose.msra.mxu0 0
        %1101 = vmatpush.bf16.xpose.msra.mxu0 0
        %1102 = vmatpush.bf16.xpose.msra.mxu0 0
        %1103 = vmatpush.bf16.xpose.msra.mxu0 0
        %1104 = vmatpush.bf16.xpose.msra.mxu0 0
        %1105 = vmatpush.bf16.xpose.msra.mxu0 0
        %1106 = vmatpush.bf16.xpose.msra.mxu0 0
        %1107 = vmatpush.bf16.xpose.msra.mxu0 %v1098
        %1108 = vmatmul.bf16.gmra.mxu0 %v1095
        %v1109 = vpop.f32.mrf.mxu0
        %v1110 = vadd.f32 %v905, %v1109
        %v1111 = vpop.f32.mrf.mxu0
        %1112 = vdwg.mxu0
        %v1113 = vsel %vm911, %v1110, -inf
        %1114 = vmax.xlane.f32.xlu0 %v1113
        %v1115 = vpop.xlane.xlu0 %1114
        %v1116 = vsub.f32 %v1110, %v1115
        %v1117 = vmul.f32 %v1116, 1.442695
        %v1118 = vpow.pop %v1117
        %v1119 = vsel %vm911, %v1118, 0.0
        %1120 = vadd.xlane.f32.xlu0 %v1119
        %v1121 = vpop.xlane.xlu0 %1120
        %v1122 = vrcp.pop %v1121
        %v1123 = vmul.f32 %v1118, %v1122
        %v1124 = vpack.c.bf16 %v1123, %v1123
        %1125 = vrot.lane.b32.xlu0 %v907, 40
        %v1126 = vpop.permute.xlu0 %1125
        %v1128 = vsel %vm911, %v1124, 0
        %v1131 = vsel %vm948, %v1126, 0
        %1133 = vmatpush.bf16.msra.mxu0 0
        %1134 = vmatpush.bf16.msra.mxu0 0
        %1135 = vmatpush.bf16.msra.mxu0 0
        %1136 = vmatpush.bf16.msra.mxu0 0
        %1137 = vmatpush.bf16.msra.mxu0 0
        %1138 = vmatpush.bf16.msra.mxu0 0
        %1139 = vmatpush.bf16.msra.mxu0 0
        %1140 = vmatpush.bf16.msra.mxu0 %v1131
        %1141 = vmatmul.bf16.gmra.mxu0 %v1128
        %v1142 = vpop.f32.mrf.mxu0
        %v1143 = vadd.f32 0.0, %v1142
        %v1144 = vpop.f32.mrf.mxu0
        %1145 = vdwg.mxu0
        %1147 = vrot.lane.b32.xlu0 %v1143, 24
        %v1148 = vpop.permute.xlu0 %1147
        %vm1150 = vcmask 261312
        %1151 = vst.msk [vmem:[#allocation3] sm:$0xff] %vm1150, %v1148
        %s1152 = scalar_lea.vmem %s773, 1
        %v1153 = vld [vmem:[%s1152] sm:$0x1]
        %v1155 = vperm.slane %v1153, 0
        %v1157 = vpack.c.bf16 %v901, %v901
        %1159 = vrot.lane.b32.xlu0 %v1157, 96
        %v1160 = vpop.permute.xlu0 %1159
        %v1162 = vsel %vm911, %v1157, 0
        %v1165 = vsel %vm911, %v1160, 0
        %1167 = vmatpush.bf16.xpose.msra.mxu0 0
        %1168 = vmatpush.bf16.xpose.msra.mxu0 0
        %1169 = vmatpush.bf16.xpose.msra.mxu0 0
        %1170 = vmatpush.bf16.xpose.msra.mxu0 0
        %1171 = vmatpush.bf16.xpose.msra.mxu0 0
        %1172 = vmatpush.bf16.xpose.msra.mxu0 0
        %1173 = vmatpush.bf16.xpose.msra.mxu0 0
        %1174 = vmatpush.bf16.xpose.msra.mxu0 %v1165
        %1175 = vmatmul.bf16.gmra.mxu0 %v1162
        %v1176 = vpop.f32.mrf.mxu0
        %v1177 = vadd.f32 %v1155, %v1176
        %v1178 = vpop.f32.mrf.mxu0
        %1179 = vdwg.mxu0
        %v1180 = vsel %vm911, %v1177, -inf
        %1181 = vmax.xlane.f32.xlu0 %v1180
        %v1182 = vpop.xlane.xlu0 %1181
        %v1183 = vsub.f32 %v1177, %v1182
        %v1184 = vmul.f32 %v1183, 1.442695
        %v1185 = vpow.pop %v1184
        %v1186 = vsel %vm911, %v1185, 0.0
        %1187 = vadd.xlane.f32.xlu0 %v1186
        %v1188 = vpop.xlane.xlu0 %1187
        %v1189 = vrcp.pop %v1188
        %v1190 = vmul.f32 %v1185, %v1189
        %v1191 = vpack.c.bf16 %v1190, %v1190
        %1192 = vrot.lane.b32.xlu0 %v1157, 64
        %v1193 = vpop.permute.xlu0 %1192
        %v1195 = vsel %vm911, %v1191, 0
        %v1198 = vsel %vm948, %v1193, 0
        %1200 = vmatpush.bf16.msra.mxu0 0
        %1201 = vmatpush.bf16.msra.mxu0 0
        %1202 = vmatpush.bf16.msra.mxu0 0
        %1203 = vmatpush.bf16.msra.mxu0 0
        %1204 = vmatpush.bf16.msra.mxu0 0
        %1205 = vmatpush.bf16.msra.mxu0 0
        %1206 = vmatpush.bf16.msra.mxu0 0
        %1207 = vmatpush.bf16.msra.mxu0 %v1198
        %1208 = vmatmul.bf16.gmra.mxu0 %v1195
        %v1209 = vpop.f32.mrf.mxu0
        %v1210 = vadd.f32 0.0, %v1209
        %v1211 = vpop.f32.mrf.mxu0
        %1212 = vdwg.mxu0
        %1213 = vst.msk [vmem:[#allocation3 + $0x8] sm:$0xff] %vm911, %v1210
        %1214 = vrot.lane.b32.xlu0 %v1157, 120
        %v1215 = vpop.permute.xlu0 %1214
        %1216 = vrot.lane.b32.xlu0 %v1157, 88
        %v1217 = vpop.permute.xlu0 %1216
        %v1219 = vsel %vm911, %v1215, 0
        %v1222 = vsel %vm911, %v1217, 0
        %1224 = vmatpush.bf16.xpose.msra.mxu0 0
        %1225 = vmatpush.bf16.xpose.msra.mxu0 0
        %1226 = vmatpush.bf16.xpose.msra.mxu0 0
        %1227 = vmatpush.bf16.xpose.msra.mxu0 0
        %1228 = vmatpush.bf16.xpose.msra.mxu0 0
        %1229 = vmatpush.bf16.xpose.msra.mxu0 0
        %1230 = vmatpush.bf16.xpose.msra.mxu0 0
        %1231 = vmatpush.bf16.xpose.msra.mxu0 %v1222
        %1232 = vmatmul.bf16.gmra.mxu0 %v1219
        %v1233 = vpop.f32.mrf.mxu0
        %v1234 = vadd.f32 %v1155, %v1233
        %v1235 = vpop.f32.mrf.mxu0
        %1236 = vdwg.mxu0
        %v1237 = vsel %vm911, %v1234, -inf
        %1238 = vmax.xlane.f32.xlu0 %v1237
        %v1239 = vpop.xlane.xlu0 %1238
        %v1240 = vsub.f32 %v1234, %v1239
        %v1241 = vmul.f32 %v1240, 1.442695
        %v1242 = vpow.pop %v1241
        %v1243 = vsel %vm911, %v1242, 0.0
        %1244 = vadd.xlane.f32.xlu0 %v1243
        %v1245 = vpop.xlane.xlu0 %1244
        %v1246 = vrcp.pop %v1245
        %v1247 = vmul.f32 %v1242, %v1246
        %v1248 = vpack.c.bf16 %v1247, %v1247
        %1249 = vrot.lane.b32.xlu0 %v1157, 56
        %v1250 = vpop.permute.xlu0 %1249
        %v1252 = vsel %vm911, %v1248, 0
        %v1255 = vsel %vm948, %v1250, 0
        %1257 = vmatpush.bf16.msra.mxu0 0
        %1258 = vmatpush.bf16.msra.mxu0 0
        %1259 = vmatpush.bf16.msra.mxu0 0
        %1260 = vmatpush.bf16.msra.mxu0 0
        %1261 = vmatpush.bf16.msra.mxu0 0
        %1262 = vmatpush.bf16.msra.mxu0 0
        %1263 = vmatpush.bf16.msra.mxu0 0
        %1264 = vmatpush.bf16.msra.mxu0 %v1255
        %1265 = vmatmul.bf16.gmra.mxu0 %v1252
        %v1266 = vpop.f32.mrf.mxu0
        %v1267 = vadd.f32 0.0, %v1266
        %v1268 = vpop.f32.mrf.mxu0
        %1269 = vdwg.mxu0
        %1271 = vrot.lane.b32.xlu0 %v1267, 8
        %v1272 = vpop.permute.xlu0 %1271
        %1274 = vst.msk [vmem:[#allocation3 + $0x8] sm:$0xff] %vm1026, %v1272
        %1275 = vrot.lane.b32.xlu0 %v1157, 112
        %v1276 = vpop.permute.xlu0 %1275
        %1277 = vrot.lane.b32.xlu0 %v1157, 80
        %v1278 = vpop.permute.xlu0 %1277
        %v1280 = vsel %vm911, %v1276, 0
        %v1283 = vsel %vm911, %v1278, 0
        %1285 = vmatpush.bf16.xpose.msra.mxu0 0
        %1286 = vmatpush.bf16.xpose.msra.mxu0 0
        %1287 = vmatpush.bf16.xpose.msra.mxu0 0
        %1288 = vmatpush.bf16.xpose.msra.mxu0 0
        %1289 = vmatpush.bf16.xpose.msra.mxu0 0
        %1290 = vmatpush.bf16.xpose.msra.mxu0 0
        %1291 = vmatpush.bf16.xpose.msra.mxu0 0
        %1292 = vmatpush.bf16.xpose.msra.mxu0 %v1283
        %1293 = vmatmul.bf16.gmra.mxu0 %v1280
        %v1294 = vpop.f32.mrf.mxu0
        %v1295 = vadd.f32 %v1155, %v1294
        %v1296 = vpop.f32.mrf.mxu0
        %1297 = vdwg.mxu0
        %v1298 = vsel %vm911, %v1295, -inf
        %1299 = vmax.xlane.f32.xlu0 %v1298
        %v1300 = vpop.xlane.xlu0 %1299
        %v1301 = vsub.f32 %v1295, %v1300
        %v1302 = vmul.f32 %v1301, 1.442695
        %v1303 = vpow.pop %v1302
        %v1304 = vsel %vm911, %v1303, 0.0
        %1305 = vadd.xlane.f32.xlu0 %v1304
        %v1306 = vpop.xlane.xlu0 %1305
        %v1307 = vrcp.pop %v1306
        %v1308 = vmul.f32 %v1303, %v1307
        %v1309 = vpack.c.bf16 %v1308, %v1308
        %1310 = vrot.lane.b32.xlu0 %v1157, 48
        %v1311 = vpop.permute.xlu0 %1310
        %v1313 = vsel %vm911, %v1309, 0
        %v1316 = vsel %vm948, %v1311, 0
        %1318 = vmatpush.bf16.msra.mxu0 0
        %1319 = vmatpush.bf16.msra.mxu0 0
        %1320 = vmatpush.bf16.msra.mxu0 0
        %1321 = vmatpush.bf16.msra.mxu0 0
        %1322 = vmatpush.bf16.msra.mxu0 0
        %1323 = vmatpush.bf16.msra.mxu0 0
        %1324 = vmatpush.bf16.msra.mxu0 0
        %1325 = vmatpush.bf16.msra.mxu0 %v1316
        %1326 = vmatmul.bf16.gmra.mxu0 %v1313
        %v1327 = vpop.f32.mrf.mxu0
        %v1328 = vadd.f32 0.0, %v1327
        %v1329 = vpop.f32.mrf.mxu0
        %1330 = vdwg.mxu0
        %1332 = vrot.lane.b32.xlu0 %v1328, 16
        %v1333 = vpop.permute.xlu0 %1332
        %1335 = vst.msk [vmem:[#allocation3 + $0x8] sm:$0xff] %vm1088, %v1333
        %1336 = vrot.lane.b32.xlu0 %v1157, 104
        %v1337 = vpop.permute.xlu0 %1336
        %1338 = vrot.lane.b32.xlu0 %v1157, 72
        %v1339 = vpop.permute.xlu0 %1338
        %v1341 = vsel %vm911, %v1337, 0
        %v1344 = vsel %vm911, %v1339, 0
        %1346 = vmatpush.bf16.xpose.msra.mxu0 0
        %1347 = vmatpush.bf16.xpose.msra.mxu0 0
        %1348 = vmatpush.bf16.xpose.msra.mxu0 0
        %1349 = vmatpush.bf16.xpose.msra.mxu0 0
        %1350 = vmatpush.bf16.xpose.msra.mxu0 0
        %1351 = vmatpush.bf16.xpose.msra.mxu0 0
        %1352 = vmatpush.bf16.xpose.msra.mxu0 0
        %1353 = vmatpush.bf16.xpose.msra.mxu0 %v1344
        %1354 = vmatmul.bf16.gmra.mxu0 %v1341
        %v1355 = vpop.f32.mrf.mxu0
        %v1356 = vadd.f32 %v1155, %v1355
        %v1357 = vpop.f32.mrf.mxu0
        %1358 = vdwg.mxu0
        %v1359 = vsel %vm911, %v1356, -inf
        %1360 = vmax.xlane.f32.xlu0 %v1359
        %v1361 = vpop.xlane.xlu0 %1360
        %v1362 = vsub.f32 %v1356, %v1361
        %v1363 = vmul.f32 %v1362, 1.442695
        %v1364 = vpow.pop %v1363
        %v1365 = vsel %vm911, %v1364, 0.0
        %1366 = vadd.xlane.f32.xlu0 %v1365
        %v1367 = vpop.xlane.xlu0 %1366
        %v1368 = vrcp.pop %v1367
        %v1369 = vmul.f32 %v1364, %v1368
        %v1370 = vpack.c.bf16 %v1369, %v1369
        %1371 = vrot.lane.b32.xlu0 %v1157, 40
        %v1372 = vpop.permute.xlu0 %1371
        %v1374 = vsel %vm911, %v1370, 0
        %v1377 = vsel %vm948, %v1372, 0
        %1379 = vmatpush.bf16.msra.mxu0 0
        %1380 = vmatpush.bf16.msra.mxu0 0
        %1381 = vmatpush.bf16.msra.mxu0 0
        %1382 = vmatpush.bf16.msra.mxu0 0
        %1383 = vmatpush.bf16.msra.mxu0 0
        %1384 = vmatpush.bf16.msra.mxu0 0
        %1385 = vmatpush.bf16.msra.mxu0 0
        %1386 = vmatpush.bf16.msra.mxu0 %v1377
        %1387 = vmatmul.bf16.gmra.mxu0 %v1374
        %v1388 = vpop.f32.mrf.mxu0
        %v1389 = vadd.f32 0.0, %v1388
        %v1390 = vpop.f32.mrf.mxu0
        %1391 = vdwg.mxu0
        %1393 = vrot.lane.b32.xlu0 %v1389, 24
        %v1394 = vpop.permute.xlu0 %1393
        %1396 = vst.msk [vmem:[#allocation3 + $0x8] sm:$0xff] %vm1150, %v1394
        %v1397 = vld [vmem:[#allocation3] sm:$0xff]
        %v1398 = vld [vmem:[#allocation3 + $0x8] sm:$0xff]
        %v1399 = vpack.c.bf16 %v1398, %v1397
        %v1400 = vld [vmem:[%s787] sm:$0xf]
        %v1401 = vld [vmem:[%s787 + $0x4] sm:$0xf]
        %v1402 = vld [vmem:[%s787 + $0x8] sm:$0xf]
        %v1403 = vld [vmem:[%s787 + $0xc] sm:$0xf]
        %v1404 = vld [vmem:[%s790] sm:$0x1]
        %v1406 = vperm.slane %v1404, 0
        %v1412 = vunpack.c.l.b16 %v1400
        %v1413 = vunpack.c.l.b16 %v1401
        %v1414 = vunpack.c.l.b16 %v1402
        %v1415 = vunpack.c.l.b16 %v1403
        %v1416 = vpack.c.b16 %v1413, %v1412
        %v1417 = vpack.c.b16 %v1415, %v1414
        %v1421 = vsel %vm885, %v1399, 0
        %1423 = vmatpush.bf16.msra.mxu0 0
        %1424 = vmatpush.bf16.msra.mxu0 0
        %1425 = vmatpush.bf16.msra.mxu0 0
        %1426 = vmatpush.bf16.msra.mxu0 0
        %1427 = vmatpush.bf16.msra.mxu0 0
        %1428 = vmatpush.bf16.msra.mxu0 0
        %1429 = vmatpush.bf16.msra.mxu0 %v1417
        %1430 = vmatpush.bf16.msra.mxu0 %v1416
        %1431 = vmatmul.bf16.gmra.mxu0 %v1421
        %v1432 = vpop.f32.mrf.mxu0
        %v1433 = vadd.f32 %v1406, %v1432
        %v1434 = vpop.f32.mrf.mxu0
        %v1435 = vadd.f32 %v1406, %v1434
        %1436 = vdwg.mxu0
        %v1437 = vadd.f32 %v1433, %v862
        %v1438 = vadd.f32 %v1435, %v863
        %v1439 = vsel %vm885, %v1437, 0.0
        %1440 = vadd.xlane.f32.xlu0 %v1439
        %v1441 = vpop.xlane.xlu0 %1440
        %v1442 = vsel %vm885, %v1438, 0.0
        %1443 = vadd.xlane.f32.xlu0 %v1442
        %v1444 = vpop.xlane.xlu0 %1443
        %v1445 = vrcp.pop 32.0
        %v1446 = vmul.f32 32.0, %v1445
        %v1447 = vsub.f32 1.0, %v1446
        %v1448 = vmul.f32 %v1445, %v1447
        %v1449 = vadd.f32 %v1445, %v1448
        %vm1450 = vweird.f32 %v1445
        %v1451 = vsel %vm1450, %v1445, %v1449
        %v1452 = vmul.f32 %v1441, %v1451
        %v1453 = vmul.f32 %v1444, %v1451
        %v1454 = vsub.f32 %v1437, %v1452
        %v1455 = vsub.f32 %v1438, %v1453
        %v1456 = vmul.f32 %v1454, %v1454
        %v1457 = vmul.f32 %v1455, %v1455
        %v1458 = vsel %vm885, %v1456, 0.0
        %1459 = vadd.xlane.f32.xlu0 %v1458
        %v1460 = vpop.xlane.xlu0 %1459
        %v1461 = vsel %vm885, %v1457, 0.0
        %1462 = vadd.xlane.f32.xlu0 %v1461
        %v1463 = vpop.xlane.xlu0 %1462
        %v1464 = vmul.f32 %v1460, %v1451
        %v1465 = vmul.f32 %v1463, %v1451
        %v1466 = vadd.f32 %v1464, 1e-05
        %v1467 = vadd.f32 %v1465, 1e-05
        %v1468 = vrsqrt.pop %v1466
        %v1469 = vmul.f32 %v1468, %v1466
        %v1470 = vmul.f32 %v1469, %v1468
        %v1471 = vmul.f32 0.5, %v1470
        %v1472 = vsub.f32 1.5, %v1471
        %v1473 = vmul.f32 %v1468, %v1472
        %vm1474 = vweird.f32 %v1466
        %vm1475 = vweird.f32 %v1468
        %vm1476 = vmor %vm1474, %vm1475
        %v1477 = vsel %vm1476, %v1468, %v1473
        %v1478 = vrsqrt.pop %v1467
        %v1479 = vmul.f32 %v1478, %v1467
        %v1480 = vmul.f32 %v1479, %v1478
        %v1481 = vmul.f32 0.5, %v1480
        %v1482 = vsub.f32 1.5, %v1481
        %v1483 = vmul.f32 %v1478, %v1482
        %vm1484 = vweird.f32 %v1467
        %vm1485 = vweird.f32 %v1478
        %vm1486 = vmor %vm1484, %vm1485
        %v1487 = vsel %vm1486, %v1478, %v1483
        %v1488 = vmul.f32 %v1454, %v1477
        %v1489 = vmul.f32 %v1455, %v1487
        %v1490 = vld [vmem:[%s793] sm:$0x1]
        %v1492 = vperm.slane %v1490, 0
        %v1494 = vmul.f32 %v1488, %v1492
        %v1495 = vmul.f32 %v1489, %v1492
        %v1496 = vld [vmem:[%s796] sm:$0x1]
        %v1498 = vperm.slane %v1496, 0
        %v1500 = vadd.f32 %v1494, %v1498
        %v1501 = vadd.f32 %v1495, %v1498
        %v1502 = vpack.c.bf16 %v1501, %v1500
        %v1503 = vld [vmem:[%s801] sm:$0xf]
        %v1504 = vld [vmem:[%s801 + $0x4] sm:$0xf]
        %v1505 = vld [vmem:[%s801 + $0x8] sm:$0xf]
        %v1506 = vld [vmem:[%s801 + $0xc] sm:$0xf]
        %v1507 = vld [vmem:[%s804] sm:$0x1]
        %v1509 = vperm.slane %v1507, 0
        %v1515 = vunpack.c.l.b16 %v1503
        %v1516 = vunpack.c.l.b16 %v1504
        %v1517 = vunpack.c.l.b16 %v1505
        %v1518 = vunpack.c.l.b16 %v1506
        %v1519 = vpack.c.b16 %v1516, %v1515
        %v1520 = vpack.c.b16 %v1518, %v1517
        %v1524 = vsel %vm885, %v1502, 0
        %1526 = vmatpush.bf16.msra.mxu0 0
        %1527 = vmatpush.bf16.msra.mxu0 0
        %1528 = vmatpush.bf16.msra.mxu0 0
        %1529 = vmatpush.bf16.msra.mxu0 0
        %1530 = vmatpush.bf16.msra.mxu0 0
        %1531 = vmatpush.bf16.msra.mxu0 0
        %1532 = vmatpush.bf16.msra.mxu0 %v1520
        %1533 = vmatpush.bf16.msra.mxu0 %v1519
        %1534 = vmatmul.bf16.gmra.mxu0 %v1524
        %v1535 = vpop.f32.mrf.mxu0
        %v1536 = vadd.f32 %v1509, %v1535
        %v1537 = vpop.f32.mrf.mxu0
        %v1538 = vadd.f32 %v1509, %v1537
        %1539 = vdwg.mxu0
        %v1540 = vmax.f32 %v1536, 0.0
        %v1541 = vmax.f32 %v1538, 0.0
        %v1542 = vpack.c.bf16 %v1541, %v1540
        %v1543 = vld [vmem:[%s809] sm:$0xf]
        %v1544 = vld [vmem:[%s809 + $0x4] sm:$0xf]
        %v1545 = vld [vmem:[%s809 + $0x8] sm:$0xf]
        %v1546 = vld [vmem:[%s809 + $0xc] sm:$0xf]
        %v1547 = vld [vmem:[%s809 + $0x10] sm:$0xf]
        %v1548 = vld [vmem:[%s809 + $0x14] sm:$0xf]
        %v1549 = vld [vmem:[%s809 + $0x18] sm:$0xf]
        %v1550 = vld [vmem:[%s809 + $0x1c] sm:$0xf]
        %v1551 = vld [vmem:[%s812] sm:$0x1]
        %v1553 = vperm.slane %v1551, 0
        %v1563 = vunpack.c.l.b16 %v1543
        %v1564 = vunpack.c.l.b16 %v1544
        %v1565 = vunpack.c.l.b16 %v1545
        %v1566 = vunpack.c.l.b16 %v1546
        %v1567 = vunpack.c.l.b16 %v1547
        %v1568 = vunpack.c.l.b16 %v1548
        %v1569 = vunpack.c.l.b16 %v1549
        %v1570 = vunpack.c.l.b16 %v1550
        %v1571 = vpack.c.b16 %v1564, %v1563
        %v1572 = vpack.c.b16 %v1566, %v1565
        %v1573 = vpack.c.b16 %v1568, %v1567
        %v1574 = vpack.c.b16 %v1570, %v1569
        %vm1579 = vcmask 523264
        %v1581 = vsel %vm1579, %v1542, 0
        %1583 = vmatpush.bf16.msra.mxu0 0
        %1584 = vmatpush.bf16.msra.mxu0 0
        %1585 = vmatpush.bf16.msra.mxu0 0
        %1586 = vmatpush.bf16.msra.mxu0 0
        %1587 = vmatpush.bf16.msra.mxu0 %v1574
        %1588 = vmatpush.bf16.msra.mxu0 %v1573
        %1589 = vmatpush.bf16.msra.mxu0 %v1572
        %1590 = vmatpush.bf16.msra.mxu0 %v1571
        %1591 = vmatmul.bf16.gmra.mxu0 %v1581
        %v1592 = vpop.f32.mrf.mxu0
        %v1593 = vadd.f32 %v1553, %v1592
        %v1594 = vpop.f32.mrf.mxu0
        %v1595 = vadd.f32 %v1553, %v1594
        %1596 = vdwg.mxu0
        %v1597 = vadd.f32 %v1593, %v1500
        %v1598 = vadd.f32 %v1595, %v1501
        %v1599 = vsel %vm885, %v1597, 0.0
        %1600 = vadd.xlane.f32.xlu0 %v1599
        %v1601 = vpop.xlane.xlu0 %1600
        %v1602 = vsel %vm885, %v1598, 0.0
        %1603 = vadd.xlane.f32.xlu0 %v1602
        %v1604 = vpop.xlane.xlu0 %1603
        %v1605 = vmul.f32 %v1601, %v1451
        %v1606 = vmul.f32 %v1604, %v1451
        %v1607 = vsub.f32 %v1597, %v1605
        %v1608 = vsub.f32 %v1598, %v1606
        %v1609 = vmul.f32 %v1607, %v1607
        %v1610 = vmul.f32 %v1608, %v1608
        %v1611 = vsel %vm885, %v1609, 0.0
        %1612 = vadd.xlane.f32.xlu0 %v1611
        %v1613 = vpop.xlane.xlu0 %1612
        %v1614 = vsel %vm885, %v1610, 0.0
        %1615 = vadd.xlane.f32.xlu0 %v1614
        %v1616 = vpop.xlane.xlu0 %1615
        %v1617 = vmul.f32 %v1613, %v1451
        %v1618 = vmul.f32 %v1616, %v1451
        %v1619 = vadd.f32 %v1617, 1e-05
        %v1620 = vadd.f32 %v1618, 1e-05
        %v1621 = vrsqrt.pop %v1619
        %v1622 = vmul.f32 %v1621, %v1619
        %v1623 = vmul.f32 %v1622, %v1621
        %v1624 = vmul.f32 0.5, %v1623
        %v1625 = vsub.f32 1.5, %v1624
        %v1626 = vmul.f32 %v1621, %v1625
        %vm1627 = vweird.f32 %v1619
        %vm1628 = vweird.f32 %v1621
        %vm1629 = vmor %vm1627, %vm1628
        %v1630 = vsel %vm1629, %v1621, %v1626
        %v1631 = vrsqrt.pop %v1620
        %v1632 = vmul.f32 %v1631, %v1620
        %v1633 = vmul.f32 %v1632, %v1631
        %v1634 = vmul.f32 0.5, %v1633
        %v1635 = vsub.f32 1.5, %v1634
        %v1636 = vmul.f32 %v1631, %v1635
        %vm1637 = vweird.f32 %v1620
        %vm1638 = vweird.f32 %v1631
        %vm1639 = vmor %vm1637, %vm1638
        %v1640 = vsel %vm1639, %v1631, %v1636
        %v1641 = vmul.f32 %v1607, %v1630
        %v1642 = vmul.f32 %v1608, %v1640
        %v1643 = vld [vmem:[%s815] sm:$0x1]
        %v1645 = vperm.slane %v1643, 0
        %v1647 = vmul.f32 %v1641, %v1645
        %v1648 = vmul.f32 %v1642, %v1645
        %v1649 = vld [vmem:[%s818] sm:$0x1]
        %v1651 = vperm.slane %v1649, 0
        %v1653 = vadd.f32 %v1647, %v1651
        %v1654 = vadd.f32 %v1648, %v1651
        %1655 = vst.msk [vmem:[#allocation2] sm:$0xff] %vm885, %v1653
        %1656 = vst.msk [vmem:[#allocation2 + $0x8] sm:$0xff] %vm885, %v1654
        %p1657 = scmp.eq.s32.totalorder %s36, 1
        // Predicated region
        $region101: #{transformer_forward.1} parent=95 // pred_check
          %p1658 = pneg %p1657
        $region102: #{transformer_forward.1} parent=95 // pred_check_branch
          %1660 = sbr.rel (%p1658) target = $region104
        $region103: #{transformer_forward.1} parent=95 // pred_region
          %v1661 = vld [vmem:[#allocation2] sm:$0xff]
          %v1662 = vld [vmem:[#allocation2 + $0x8] sm:$0xff]
          %v1663 = vld [vmem:[%s16] sm:$0xff]
          %1665 = vset.pattern.permute.xlu0 0
          %1666 = vperm.xlu0 %1665, %v1663
          %v1667 = vpop.permute.xlu0 %1666
          %v1669 = vmul.f32 %v1661, %v1667
          %v1670 = vmul.f32 %v1662, %v1667
          %v1671 = vsel %vm885, %v1669, 0.0
          %v1672 = vrot.slane %v1671, 4
          %v1673 = vadd.f32 %v1671, %v1672
          %v1674 = vrot.slane %v1673, 2
          %v1675 = vadd.f32 %v1673, %v1674
          %v1676 = vrot.slane %v1675, 1
          %v1677 = vadd.f32 %v1675, %v1676
          %v1678 = vsel %vm885, %v1670, 0.0
          %v1679 = vrot.slane %v1678, 4
          %v1680 = vadd.f32 %v1678, %v1679
          %v1681 = vrot.slane %v1680, 2
          %v1682 = vadd.f32 %v1680, %v1681
          %v1683 = vrot.slane %v1682, 1
          %v1684 = vadd.f32 %v1682, %v1683
          %v1685 = vpack.c.bf16 %v1677, %v1677
          %v1686 = vpack.c.bf16 %v1684, %v1684
          %v1687 = vld [vmem:[%s17] sm:$0xf]
          %v1688 = vld [vmem:[%s17 + $0x4] sm:$0xf]
          %v1689 = vld [vmem:[%s17 + $0x8] sm:$0xf]
          %v1690 = vld [vmem:[%s17 + $0xc] sm:$0xf]
          %v1691 = vld [vmem:[%s18] sm:$0x1]
          %v1693 = vperm.slane %v1691, 0
          %v1697 = vunpack.c.l.b16 %v1685
          %v1698 = vunpack.c.l.b16 %v1686
          %vm1699 = vcmask 1041409
          %v1700 = vsel %vm1699, %v1698, %v1697
          %v1701 = vpack.c.b16 %v1700, %v1700
          %v1706 = vunpack.c.l.b16 %v1687
          %v1707 = vunpack.c.l.b16 %v1688
          %v1708 = vunpack.c.l.b16 %v1689
          %v1709 = vunpack.c.l.b16 %v1690
          %v1710 = vpack.c.b16 %v1707, %v1706
          %v1711 = vpack.c.b16 %v1709, %v1708
          %v1715 = vsel %vm885, %v1701, 0
          %1717 = vmatpush.bf16.msra.mxu0 0
          %1718 = vmatpush.bf16.msra.mxu0 0
          %1719 = vmatpush.bf16.msra.mxu0 0
          %1720 = vmatpush.bf16.msra.mxu0 0
          %1721 = vmatpush.bf16.msra.mxu0 0
          %1722 = vmatpush.bf16.msra.mxu0 0
          %1723 = vmatpush.bf16.msra.mxu0 %v1711
          %1724 = vmatpush.bf16.msra.mxu0 %v1710
          %1725 = vmatmul.bf16.gmra.mxu0 %v1715
          %v1726 = vpop.f32.mrf.mxu0
          %v1727 = vadd.f32 %v1693, %v1726
          %v1728 = vpop.f32.mrf.mxu0
          %1729 = vdwg.mxu0
          %1730 = vst [vmem:[#allocation4] sm:$0x3] %v1727
        $region104: #{transformer_forward.1} parent=95 // pred_fallthru
          _
        // Predicated region
        $region105: #{transformer_forward.1} parent=95 // pred_check
          %p1731 = pneg %p530
        $region106: #{transformer_forward.1} parent=95 // pred_check_branch
          %1733 = sbr.rel (%p1731) target = $region108
        $region107: #{transformer_forward.1} parent=95 // pred_region
          %1735 = vsyncadd [#allocation5], 0
          %s1736 = smul.addr %s35, 2
          %s1737 = scalar_lea.hbm %s19, %s1736
          %s1739 = sshll.u32 [#allocation4], 4
          %s1740 = int_to_ptr.vmem [resolvable:$true] %s1739
          %s1741 = sshll.u32 %s1737, 4
          %s1742 = int_to_ptr.hbm [resolvable:$true] %s1741
          %1744 = dma.vmem_to_hbm [thread:$0]  %s1740, 32, %s1742, [#allocation5]
        $region108: #{transformer_forward.1} parent=95 // pred_fallthru
          _
        // Predicated region
        $region109: #{transformer_forward.1} parent=95 // pred_check
          %p1745 = pneg %p530
        $region110: #{transformer_forward.1} parent=95 // pred_check_branch
          %1747 = sbr.rel (%p1745) target = $region112
        $region111: #{transformer_forward.1} parent=95 // pred_region
          %1749 = dma.done [#allocation5], 32
        $region112: #{transformer_forward.1} parent=95 // pred_fallthru
          _
      $region96: #{transformer_forward.1} parent=5 // pred_fallthru
        _
      %p1750 = scmp.le.s32.totalorder 2, %s26
      // Predicated region
      $region113: #{transformer_forward.1} parent=5 // pred_check
        %p1751 = pneg %p1750
      $region114: #{transformer_forward.1} parent=5 // pred_check_branch
        %1753 = sbr.rel (%p1751) target = $region116
      $region115: #{transformer_forward.1} parent=5 // pred_region
        %s1754 = ssub.s32 %s26, 2
      $region116: #{transformer_forward.1} parent=5 // pred_fallthru
        _
    $region6: #{transformer_forward.1} parent=1 // loop_footer
      %s30 = sadd.s32 1, %s26
    $region7: #{transformer_forward.1} parent=1 // loop_footer_branch
      %25 = sbr.rel target = $region3
    $region8: #{transformer_forward.1} parent=1 // loop_exit
      _
    %1755 = vsyncpa [#allocation5], 1
    %s1756 = scalar_lea.sflag [#allocation5], 1
    %1757 = vsyncpa %s1756, 1

</llo_original>
